<compile_context>
chip_gen: v7x
topology: tpu7x:2x2x1
jax: 0.10.0
libtpu: 0.0.40
codegen_flags: <defaults>
</compile_context>

<pallas_src>
import math

import jax
import jax.numpy as jnp
from jax.experimental import pallas as pl
from jax.experimental.pallas import tpu as pltpu


def _gelu_tanh(x):
    # tanh-form GELU (torch F.gelu(approximate="tanh")): tanh is a native EUP op,
    # erf is a ~20-op VALU polynomial.  Max abs deviation from exact-erf GELU ~1e-3.
    c0 = 0.7978845608028654   # sqrt(2/pi)
    c1 = 0.044715
    return 0.5 * x * (1.0 + jnp.tanh(c0 * (x + c1 * x * x * x)))


def fourier_mlp_kernel(coords_ref, b2pi_ref, phase_ref,
                       w0_ref, b0_ref, w1_ref, b1_ref,
                       w2_ref, b2_ref, w3_ref, b3_ref,
                       out_ref):
    # coords_ref : (cd, TM)         f32, pixels on the 128-lane axis
    # b2pi_ref   : (2*mapping, cd)  f32, 2*pi*B rows duplicated (sin block / cos block)
    # phase_ref  : (2*mapping, 1)   f32, [0..0, pi/2..pi/2]^T  (folds cos into sin)
    # w0_ref     : (nc, 2*mapping)  compute dtype (bf16 on v6e/v7x, f32 on v5e)
    # w1/w2      : (nc, nc), w3 : (3, nc)   compute dtype
    # b0/b1/b2   : (nc, 1), b3 : (3, 1)     f32 (added after the f32-accumulated dot)
    cdt = w0_ref.dtype
    coords = coords_ref[...]
    b2pi = b2pi_ref[...]
    cd = coords.shape[0]

    # Fourier projection: xp = (2*pi*B_dup) @ coords + phase.  K = cd = 2 is tiny, so
    # use VPU broadcast FMAs instead of a degenerate K=2 MXU matmul.  Keep f32: the
    # arguments reach ~+-400 and need full-precision range reduction for sin().
    xp = phase_ref[...] + b2pi[:, 0:1] * coords[0:1, :]
    for k in range(1, cd):
        xp = xp + b2pi[:, k:k + 1] * coords[k:k + 1, :]

    # concat([sin(xp), cos(xp)]) == sin(xp + [0; pi/2]) -> single (2*mapping, TM)
    # feature tensor and a single K = 2*mapping layer-0 matmul.
    feat = jnp.sin(xp).astype(cdt)

    h = jnp.dot(w0_ref[...], feat, preferred_element_type=jnp.float32) + b0_ref[...]
    h = _gelu_tanh(h.astype(cdt))
    h = jnp.dot(w1_ref[...], h, preferred_element_type=jnp.float32) + b1_ref[...]
    h = _gelu_tanh(h.astype(cdt))
    h = jnp.dot(w2_ref[...], h, preferred_element_type=jnp.float32) + b2_ref[...]
    h = _gelu_tanh(h.astype(cdt))
    o = jnp.dot(w3_ref[...], h, preferred_element_type=jnp.float32) + b3_ref[...]
    out_ref[...] = jax.nn.sigmoid(o)                 # (3, TM) f32, lane-dense


def init_params(key, input_dim, num_channels, coordinate_dim=2, scale=10.0):
    """Deterministic synthetic parameters mirroring the module's __init__ shapes.

    Weights stay in PyTorch (out_features, in_features) layout for the transposed
    (channels, pixels) kernel.
    """
    mapping = input_dim // 2
    keys = jax.random.split(key, 5)
    B_gauss = jax.random.normal(keys[0], (mapping, coordinate_dim),
                                dtype=jnp.float32) * scale

    def linear(k, fan_in, fan_out):
        kw, kb = jax.random.split(k)
        bound = 1.0 / math.sqrt(fan_in)
        w = jax.random.uniform(kw, (fan_out, fan_in), jnp.float32, -bound, bound)
        b = jax.random.uniform(kb, (fan_out,), jnp.float32, -bound, bound)
        return w, b

    w0, b0 = linear(keys[1], input_dim, num_channels)
    w1, b1 = linear(keys[2], num_channels, num_channels)
    w2, b2 = linear(keys[3], num_channels, num_channels)
    w3, b3 = linear(keys[4], num_channels, 3)
    return (B_gauss, w0, b0, w1, b1, w2, b2, w3, b3)


def _bf16_native_default():
    """bf16 VPU/EUP/MXU is native on v6e/v7x; keep f32 on v5e/v5p/v4 and older."""
    try:
        kind = jax.devices()[0].device_kind.lower()
    except Exception:
        return False
    return not any(tag in kind for tag in ("v2", "v3", "v4", "v5"))


def transform_fourier_forward(x, params, tm=8192, use_bf16=None, core_parallel=False):
    """Pallas forward: x [B,H,W,coord_dim] -> (out [B,H,W,3], None)."""
    if use_bf16 is None:
        use_bf16 = _bf16_native_default()
    cdt = jnp.bfloat16 if use_bf16 else jnp.float32

    B_gauss, w0, b0, w1, b1, w2, b2, w3, b3 = params
    mapping, cd = B_gauss.shape
    nc = w1.shape[0]

    Bn, H, W, cdx = x.shape
    assert cdx == cd
    N = Bn * H * W
    coords_t = x.reshape(N, cd).astype(jnp.float32).T            # (cd, N)

    # Large tiles amortize the ~0.35us per-grid-step overhead; cap so the grid keeps
    # >= 8 steps for large N (pipelining, and both TensorCores on v7x get work).
    tm_eff = max(128, min(tm, pl.cdiv(N, 8 * 128) * 128))
    n_pad = pl.cdiv(N, tm_eff) * tm_eff
    if n_pad != N:
        coords_t = jnp.pad(coords_t, ((0, 0), (0, n_pad - N)))

    # Fold 2*pi into B once, duplicate the rows and add a pi/2 phase column so that
    # concat([sin(xp), cos(xp)]) == sin(B2pi_dup @ x + phase).
    b2pi = jnp.float32(2.0 * math.pi) * B_gauss
    b2pi_dup = jnp.concatenate([b2pi, b2pi], axis=0)             # (2*mapping, cd)
    phase = jnp.concatenate(
        [jnp.zeros((mapping, 1), jnp.float32),
         jnp.full((mapping, 1), jnp.float32(0.5 * math.pi))], axis=0)

    # Weights in compute dtype (bf16 on v6e/v7x); biases stay f32 (added post-dot).
    w0c, w1c, w2c, w3c = (w.astype(cdt) for w in (w0, w1, w2, w3))
    b0c, b1c, b2c, b3c = (b.reshape(-1, 1).astype(jnp.float32)
                          for b in (b0, b1, b2, b3))

    grid = (n_pad // tm_eff,)
    sem = (pltpu.CORE_PARALLEL,) if core_parallel else ("parallel",)

    out_t = pl.pallas_call(
        fourier_mlp_kernel,
        out_shape=jax.ShapeDtypeStruct((3, n_pad), jnp.float32),
        grid_spec=pltpu.PrefetchScalarGridSpec(
            num_scalar_prefetch=0,
            grid=grid,
            in_specs=[
                pl.BlockSpec((cd, tm_eff), lambda i: (0, i)),        # coords tile
                pl.BlockSpec((2 * mapping, cd), lambda i: (0, 0)),   # 2*pi*B (dup)
                pl.BlockSpec((2 * mapping, 1), lambda i: (0, 0)),    # phase column
                pl.BlockSpec((nc, 2 * mapping), lambda i: (0, 0)),   # W0
                pl.BlockSpec((nc, 1), lambda i: (0, 0)),             # b0
                pl.BlockSpec((nc, nc), lambda i: (0, 0)),            # W1
                pl.BlockSpec((nc, 1), lambda i: (0, 0)),             # b1
                pl.BlockSpec((nc, nc), lambda i: (0, 0)),            # W2
                pl.BlockSpec((nc, 1), lambda i: (0, 0)),             # b2
                pl.BlockSpec((3, nc), lambda i: (0, 0)),             # W3
                pl.BlockSpec((3, 1), lambda i: (0, 0)),              # b3
            ],
            out_specs=pl.BlockSpec((3, tm_eff), lambda i: (0, i)),
        ),
        compiler_params=pltpu.CompilerParams(
            dimension_semantics=sem,
            vmem_limit_bytes=48 * 1024 * 1024),
    )(coords_t, b2pi_dup, phase, w0c, b0c, w1c, b1c, w2c, b2c, w3c, b3c)

    # (3, n_pad) output block is lane-dense; the transpose back to channels-last is
    # one cheap XLA pass over 3*N*4 bytes (negligible vs the in-kernel compute).
    out = out_t[:, :N].T.reshape(Bn, H, W, 3)
    return out, None


def _reference_forward(x, params):
    """Pure-JAX f32 reference of the same math (sanity check for the kernel)."""
    B_gauss, w0, b0, w1, b1, w2, b2, w3, b3 = params
    with jax.default_matmul_precision("float32"):
        xp = jnp.float32(2.0 * math.pi) * (x.astype(jnp.float32) @ B_gauss.T)
        feat = jnp.concatenate([jnp.sin(xp), jnp.cos(xp)], axis=-1)
        h = _gelu_tanh(feat @ w0.T + b0)
        h = _gelu_tanh(h @ w1.T + b1)
        h = _gelu_tanh(h @ w2.T + b2)
        return jax.nn.sigmoid(h @ w3.T + b3)


if __name__ == "__main__":
    # Module hyperparameters (small, consistent with the PyTorch __init__):
    input_dim, num_layers, num_channels = 32, 4, 32
    num_samples, coordinate_dim = 2, 2

    key = jax.random.PRNGKey(0)
    k_params, k_x = jax.random.split(key)
    params = init_params(k_params, input_dim, num_channels, coordinate_dim)

    # x: [B, H, W, coordinate_dim] normalized coordinates
    x = jax.random.uniform(k_x, (2, 16, 16, coordinate_dim), dtype=jnp.float32)

    use_bf16 = _bf16_native_default()
    out, transforms = transform_fourier_forward(x, params, use_bf16=use_bf16)
    out = jax.block_until_ready(out)

    ref = _reference_forward(x, params)
    # bf16 matmul/activation path (v6e/v7x) needs a looser tolerance vs the f32 ref.
    atol = 5e-2 if use_bf16 else 2e-3
    if out.shape != (2, 16, 16, 3) or transforms is not None:
        raise SystemExit("bad output structure")
    max_err = float(jnp.max(jnp.abs(out - ref)))
    if not (max_err <= atol):
        raise SystemExit(f"mismatch vs reference: max abs err {max_err:.3e} > {atol}")

    print("KERNEL_OK")
</pallas_src>

<mosaic_0001>
module attributes {stable_mosaic.version = 11 : i64} {
  func.func @fourier_mlp_kernel(%arg0: i32, %arg1: memref<2x128xf32, #tpu.memory_space<vmem>>, %arg2: memref<32x2xf32, #tpu.memory_space<vmem>>, %arg3: memref<32x1xf32, #tpu.memory_space<vmem>>, %arg4: memref<32x32xbf16, #tpu.memory_space<vmem>>, %arg5: memref<32x1xf32, #tpu.memory_space<vmem>>, %arg6: memref<32x32xbf16, #tpu.memory_space<vmem>>, %arg7: memref<32x1xf32, #tpu.memory_space<vmem>>, %arg8: memref<32x32xbf16, #tpu.memory_space<vmem>>, %arg9: memref<32x1xf32, #tpu.memory_space<vmem>>, %arg10: memref<3x32xbf16, #tpu.memory_space<vmem>>, %arg11: memref<3x1xf32, #tpu.memory_space<vmem>>, %arg12: memref<3x128xf32, #tpu.memory_space<vmem>>) attributes {dimension_semantics = [#tpu.dimension_semantics<parallel>], iteration_bounds = array<i64: 4>, scalar_prefetch = 0 : i64, scratch_operands = 0 : i64, tpu.core_type = #tpu.core_type<tc>, window_params = [{transform_indices = @transform_0, window_bounds = array<i64: 2, 128>}, {pipeline_mode = #tpu.pipeline_mode<synchronous>, transform_indices = @transform_1, window_bounds = array<i64: 32, 2>}, {pipeline_mode = #tpu.pipeline_mode<synchronous>, transform_indices = @transform_2, window_bounds = array<i64: 32, 1>}, {pipeline_mode = #tpu.pipeline_mode<synchronous>, transform_indices = @transform_3, window_bounds = array<i64: 32, 32>}, {pipeline_mode = #tpu.pipeline_mode<synchronous>, transform_indices = @transform_4, window_bounds = array<i64: 32, 1>}, {pipeline_mode = #tpu.pipeline_mode<synchronous>, transform_indices = @transform_5, window_bounds = array<i64: 32, 32>}, {pipeline_mode = #tpu.pipeline_mode<synchronous>, transform_indices = @transform_6, window_bounds = array<i64: 32, 1>}, {pipeline_mode = #tpu.pipeline_mode<synchronous>, transform_indices = @transform_7, window_bounds = array<i64: 32, 32>}, {pipeline_mode = #tpu.pipeline_mode<synchronous>, transform_indices = @transform_8, window_bounds = array<i64: 32, 1>}, {pipeline_mode = #tpu.pipeline_mode<synchronous>, transform_indices = @transform_9, window_bounds = array<i64: 3, 32>}, {pipeline_mode = #tpu.pipeline_mode<synchronous>, transform_indices = @transform_10, window_bounds = array<i64: 3, 1>}, {transform_indices = @transform_11, window_bounds = array<i64: 3, 128>}]} {
    %c0 = arith.constant 0 : index
    %c0_0 = arith.constant 0 : index
    %0 = vector.load %arg1[%c0, %c0_0] : memref<2x128xf32, #tpu.memory_space<vmem>>, vector<2x128xf32>
    %c0_1 = arith.constant 0 : index
    %c0_2 = arith.constant 0 : index
    %1 = vector.load %arg2[%c0_1, %c0_2] : memref<32x2xf32, #tpu.memory_space<vmem>>, vector<32x2xf32>
    %c0_3 = arith.constant 0 : index
    %c0_4 = arith.constant 0 : index
    %2 = vector.load %arg3[%c0_3, %c0_4] : memref<32x1xf32, #tpu.memory_space<vmem>>, vector<32x1xf32>
    %3 = vector.extract_strided_slice %1 {offsets = [0, 0], sizes = [32, 1], strides = [1, 1]} : vector<32x2xf32> to vector<32x1xf32>
    %4 = vector.extract_strided_slice %0 {offsets = [0, 0], sizes = [1, 128], strides = [1, 1]} : vector<2x128xf32> to vector<1x128xf32>
    %5 = vector.broadcast %3 : vector<32x1xf32> to vector<32x128xf32>
    %6 = vector.broadcast %4 : vector<1x128xf32> to vector<32x128xf32>
    %7 = arith.mulf %5, %6 : vector<32x128xf32>
    %8 = vector.broadcast %2 : vector<32x1xf32> to vector<32x128xf32>
    %9 = arith.addf %8, %7 : vector<32x128xf32>
    %10 = vector.extract_strided_slice %1 {offsets = [0, 1], sizes = [32, 1], strides = [1, 1]} : vector<32x2xf32> to vector<32x1xf32>
    %11 = vector.extract_strided_slice %0 {offsets = [1, 0], sizes = [1, 128], strides = [1, 1]} : vector<2x128xf32> to vector<1x128xf32>
    %12 = vector.broadcast %10 : vector<32x1xf32> to vector<32x128xf32>
    %13 = vector.broadcast %11 : vector<1x128xf32> to vector<32x128xf32>
    %14 = arith.mulf %12, %13 : vector<32x128xf32>
    %15 = arith.addf %9, %14 : vector<32x128xf32>
    %16 = math.sin %15 : vector<32x128xf32>
    %17 = arith.truncf %16 : vector<32x128xf32> to vector<32x128xbf16>
    %c0_5 = arith.constant 0 : index
    %c0_6 = arith.constant 0 : index
    %18 = vector.load %arg4[%c0_5, %c0_6] : memref<32x32xbf16, #tpu.memory_space<vmem>>, vector<32x32xbf16>
    %cst = arith.constant dense<0.000000e+00> : vector<32x128xf32>
    %19 = tpu.matmul %18, %17, %cst {dimension_numbers = #tpu.dot_dimension_numbers<[1], [0], [0], [1], [0, 0, 1, 1], [], []>} : vector<32x32xbf16>, vector<32x128xbf16>, vector<32x128xf32> -> vector<32x128xf32>
    %c0_7 = arith.constant 0 : index
    %c0_8 = arith.constant 0 : index
    %20 = vector.load %arg5[%c0_7, %c0_8] : memref<32x1xf32, #tpu.memory_space<vmem>>, vector<32x1xf32>
    %21 = vector.broadcast %20 : vector<32x1xf32> to vector<32x128xf32>
    %22 = arith.addf %19, %21 : vector<32x128xf32>
    %23 = arith.truncf %22 : vector<32x128xf32> to vector<32x128xbf16>
    %cst_9 = arith.constant 5.000000e-01 : bf16
    %24 = vector.broadcast %cst_9 : bf16 to vector<32x128xbf16>
    %25 = arith.mulf %24, %23 : vector<32x128xbf16>
    %cst_10 = arith.constant 4.467770e-02 : bf16
    %26 = vector.broadcast %cst_10 : bf16 to vector<32x128xbf16>
    %27 = arith.mulf %26, %23 : vector<32x128xbf16>
    %28 = arith.mulf %27, %23 : vector<32x128xbf16>
    %29 = arith.mulf %28, %23 : vector<32x128xbf16>
    %30 = arith.addf %23, %29 : vector<32x128xbf16>
    %cst_11 = arith.constant 7.968750e-01 : bf16
    %31 = vector.broadcast %cst_11 : bf16 to vector<32x128xbf16>
    %32 = arith.mulf %31, %30 : vector<32x128xbf16>
    %33 = math.tanh %32 : vector<32x128xbf16>
    %cst_12 = arith.constant 1.000000e+00 : bf16
    %34 = vector.broadcast %cst_12 : bf16 to vector<32x128xbf16>
    %35 = arith.addf %34, %33 : vector<32x128xbf16>
    %36 = arith.mulf %25, %35 : vector<32x128xbf16>
    %c0_13 = arith.constant 0 : index
    %c0_14 = arith.constant 0 : index
    %37 = vector.load %arg6[%c0_13, %c0_14] : memref<32x32xbf16, #tpu.memory_space<vmem>>, vector<32x32xbf16>
    %cst_15 = arith.constant dense<0.000000e+00> : vector<32x128xf32>
    %38 = tpu.matmul %37, %36, %cst_15 {dimension_numbers = #tpu.dot_dimension_numbers<[1], [0], [0], [1], [0, 0, 1, 1], [], []>} : vector<32x32xbf16>, vector<32x128xbf16>, vector<32x128xf32> -> vector<32x128xf32>
    %c0_16 = arith.constant 0 : index
    %c0_17 = arith.constant 0 : index
    %39 = vector.load %arg7[%c0_16, %c0_17] : memref<32x1xf32, #tpu.memory_space<vmem>>, vector<32x1xf32>
    %40 = vector.broadcast %39 : vector<32x1xf32> to vector<32x128xf32>
    %41 = arith.addf %38, %40 : vector<32x128xf32>
    %42 = arith.truncf %41 : vector<32x128xf32> to vector<32x128xbf16>
    %cst_18 = arith.constant 5.000000e-01 : bf16
    %43 = vector.broadcast %cst_18 : bf16 to vector<32x128xbf16>
    %44 = arith.mulf %43, %42 : vector<32x128xbf16>
    %cst_19 = arith.constant 4.467770e-02 : bf16
    %45 = vector.broadcast %cst_19 : bf16 to vector<32x128xbf16>
    %46 = arith.mulf %45, %42 : vector<32x128xbf16>
    %47 = arith.mulf %46, %42 : vector<32x128xbf16>
    %48 = arith.mulf %47, %42 : vector<32x128xbf16>
    %49 = arith.addf %42, %48 : vector<32x128xbf16>
    %cst_20 = arith.constant 7.968750e-01 : bf16
    %50 = vector.broadcast %cst_20 : bf16 to vector<32x128xbf16>
    %51 = arith.mulf %50, %49 : vector<32x128xbf16>
    %52 = math.tanh %51 : vector<32x128xbf16>
    %cst_21 = arith.constant 1.000000e+00 : bf16
    %53 = vector.broadcast %cst_21 : bf16 to vector<32x128xbf16>
    %54 = arith.addf %53, %52 : vector<32x128xbf16>
    %55 = arith.mulf %44, %54 : vector<32x128xbf16>
    %c0_22 = arith.constant 0 : index
    %c0_23 = arith.constant 0 : index
    %56 = vector.load %arg8[%c0_22, %c0_23] : memref<32x32xbf16, #tpu.memory_space<vmem>>, vector<32x32xbf16>
    %cst_24 = arith.constant dense<0.000000e+00> : vector<32x128xf32>
    %57 = tpu.matmul %56, %55, %cst_24 {dimension_numbers = #tpu.dot_dimension_numbers<[1], [0], [0], [1], [0, 0, 1, 1], [], []>} : vector<32x32xbf16>, vector<32x128xbf16>, vector<32x128xf32> -> vector<32x128xf32>
    %c0_25 = arith.constant 0 : index
    %c0_26 = arith.constant 0 : index
    %58 = vector.load %arg9[%c0_25, %c0_26] : memref<32x1xf32, #tpu.memory_space<vmem>>, vector<32x1xf32>
    %59 = vector.broadcast %58 : vector<32x1xf32> to vector<32x128xf32>
    %60 = arith.addf %57, %59 : vector<32x128xf32>
    %61 = arith.truncf %60 : vector<32x128xf32> to vector<32x128xbf16>
    %cst_27 = arith.constant 5.000000e-01 : bf16
    %62 = vector.broadcast %cst_27 : bf16 to vector<32x128xbf16>
    %63 = arith.mulf %62, %61 : vector<32x128xbf16>
    %cst_28 = arith.constant 4.467770e-02 : bf16
    %64 = vector.broadcast %cst_28 : bf16 to vector<32x128xbf16>
    %65 = arith.mulf %64, %61 : vector<32x128xbf16>
    %66 = arith.mulf %65, %61 : vector<32x128xbf16>
    %67 = arith.mulf %66, %61 : vector<32x128xbf16>
    %68 = arith.addf %61, %67 : vector<32x128xbf16>
    %cst_29 = arith.constant 7.968750e-01 : bf16
    %69 = vector.broadcast %cst_29 : bf16 to vector<32x128xbf16>
    %70 = arith.mulf %69, %68 : vector<32x128xbf16>
    %71 = math.tanh %70 : vector<32x128xbf16>
    %cst_30 = arith.constant 1.000000e+00 : bf16
    %72 = vector.broadcast %cst_30 : bf16 to vector<32x128xbf16>
    %73 = arith.addf %72, %71 : vector<32x128xbf16>
    %74 = arith.mulf %63, %73 : vector<32x128xbf16>
    %c0_31 = arith.constant 0 : index
    %c0_32 = arith.constant 0 : index
    %75 = vector.load %arg10[%c0_31, %c0_32] : memref<3x32xbf16, #tpu.memory_space<vmem>>, vector<3x32xbf16>
    %cst_33 = arith.constant dense<0.000000e+00> : vector<3x128xf32>
    %76 = tpu.matmul %75, %74, %cst_33 {dimension_numbers = #tpu.dot_dimension_numbers<[1], [0], [0], [1], [0, 0, 1, 1], [], []>} : vector<3x32xbf16>, vector<32x128xbf16>, vector<3x128xf32> -> vector<3x128xf32>
    %c0_34 = arith.constant 0 : index
    %c0_35 = arith.constant 0 : index
    %77 = vector.load %arg11[%c0_34, %c0_35] : memref<3x1xf32, #tpu.memory_space<vmem>>, vector<3x1xf32>
    %78 = vector.broadcast %77 : vector<3x1xf32> to vector<3x128xf32>
    %79 = arith.addf %76, %78 : vector<3x128xf32>
    %80 = arith.negf %79 : vector<3x128xf32>
    %81 = math.exp %80 : vector<3x128xf32>
    %cst_36 = arith.constant 1.000000e+00 : f32
    %82 = vector.broadcast %cst_36 : f32 to vector<3x128xf32>
    %83 = arith.addf %82, %81 : vector<3x128xf32>
    %84 = arith.divf %82, %83 : vector<3x128xf32>
    %c0_37 = arith.constant 0 : index
    %c0_38 = arith.constant 0 : index
    %85 = vector.load %arg12[%c0_37, %c0_38] : memref<3x128xf32, #tpu.memory_space<vmem>>, vector<3x128xf32>
    tpu.vector_store %arg12[%c0_37, %c0_38], %84 {strides = array<i32>} : memref<3x128xf32, #tpu.memory_space<vmem>>, vector<3x128xf32>,
    return
  }
  func.func @transform_0(%arg0: i32) -> (i32, i32) {
    %c0_i32 = arith.constant 0 : i32
    %c0_i32_0 = arith.constant 0 : i32
    return %c0_i32, %arg0 : i32, i32
  }
  func.func @transform_1(%arg0: i32) -> (i32, i32) {
    %c0_i32 = arith.constant 0 : i32
    %c0_i32_0 = arith.constant 0 : i32
    %c0_i32_1 = arith.constant 0 : i32
    return %c0_i32, %c0_i32_0 : i32, i32
  }
  func.func @transform_2(%arg0: i32) -> (i32, i32) {
    %c0_i32 = arith.constant 0 : i32
    %c0_i32_0 = arith.constant 0 : i32
    %c0_i32_1 = arith.constant 0 : i32
    return %c0_i32, %c0_i32_0 : i32, i32
  }
  func.func @transform_3(%arg0: i32) -> (i32, i32) {
    %c0_i32 = arith.constant 0 : i32
    %c0_i32_0 = arith.constant 0 : i32
    %c0_i32_1 = arith.constant 0 : i32
    return %c0_i32, %c0_i32_0 : i32, i32
  }
  func.func @transform_4(%arg0: i32) -> (i32, i32) {
    %c0_i32 = arith.constant 0 : i32
    %c0_i32_0 = arith.constant 0 : i32
    %c0_i32_1 = arith.constant 0 : i32
    return %c0_i32, %c0_i32_0 : i32, i32
  }
  func.func @transform_5(%arg0: i32) -> (i32, i32) {
    %c0_i32 = arith.constant 0 : i32
    %c0_i32_0 = arith.constant 0 : i32
    %c0_i32_1 = arith.constant 0 : i32
    return %c0_i32, %c0_i32_0 : i32, i32
  }
  func.func @transform_6(%arg0: i32) -> (i32, i32) {
    %c0_i32 = arith.constant 0 : i32
    %c0_i32_0 = arith.constant 0 : i32
    %c0_i32_1 = arith.constant 0 : i32
    return %c0_i32, %c0_i32_0 : i32, i32
  }
  func.func @transform_7(%arg0: i32) -> (i32, i32) {
    %c0_i32 = arith.constant 0 : i32
    %c0_i32_0 = arith.constant 0 : i32
    %c0_i32_1 = arith.constant 0 : i32
    return %c0_i32, %c0_i32_0 : i32, i32
  }
  func.func @transform_8(%arg0: i32) -> (i32, i32) {
    %c0_i32 = arith.constant 0 : i32
    %c0_i32_0 = arith.constant 0 : i32
    %c0_i32_1 = arith.constant 0 : i32
    return %c0_i32, %c0_i32_0 : i32, i32
  }
  func.func @transform_9(%arg0: i32) -> (i32, i32) {
    %c0_i32 = arith.constant 0 : i32
    %c0_i32_0 = arith.constant 0 : i32
    %c0_i32_1 = arith.constant 0 : i32
    return %c0_i32, %c0_i32_0 : i32, i32
  }
  func.func @transform_10(%arg0: i32) -> (i32, i32) {
    %c0_i32 = arith.constant 0 : i32
    %c0_i32_0 = arith.constant 0 : i32
    %c0_i32_1 = arith.constant 0 : i32
    return %c0_i32, %c0_i32_0 : i32, i32
  }
  func.func @transform_11(%arg0: i32) -> (i32, i32) {
    %c0_i32 = arith.constant 0 : i32
    %c0_i32_0 = arith.constant 0 : i32
    return %c0_i32, %arg0 : i32, i32
  }
}

</mosaic_0001>

<llo_original>
// kernel: tpu_custom_call.1
$region0: #{tpu_custom_call.1}
  #allocation0 [shape = 'u32[]', space=smem, size = 0x4, offset = 0x4, fixed_abs, tag = 'smem constant byte address 0x4 - core index']
  #allocation1 [shape = 'u32[144,128]{1,0:T(1,128)}', space=vmem, size = 0x12000, scoped, tag = 'internal scratch']
  %s0 = inlined_call_operand.vmem [shape: f32[2,512], index: 0, kind: input, shape index: {}]
  %s1 = inlined_call_operand.vmem [shape: f32[32,2], index: 1, kind: input, shape index: {}]
  %s2 = inlined_call_operand.vmem [shape: f32[32,1], index: 2, kind: input, shape index: {}]
  %s3 = inlined_call_operand.vmem [shape: bf16[32,32], index: 3, kind: input, shape index: {}]
  %s4 = inlined_call_operand.vmem [shape: f32[32,1], index: 4, kind: input, shape index: {}]
  %s5 = inlined_call_operand.vmem [shape: bf16[32,32], index: 5, kind: input, shape index: {}]
  %s6 = inlined_call_operand.vmem [shape: f32[32,1], index: 6, kind: input, shape index: {}]
  %s7 = inlined_call_operand.vmem [shape: bf16[32,32], index: 7, kind: input, shape index: {}]
  %s8 = inlined_call_operand.vmem [shape: f32[32,1], index: 8, kind: input, shape index: {}]
  %s9 = inlined_call_operand.vmem [shape: bf16[3,32], index: 9, kind: input, shape index: {}]
  %s10 = inlined_call_operand.vmem [shape: f32[3,1], index: 10, kind: input, shape index: {}]
  %s11 = inlined_call_operand.hbm [shape: f32[3,512], index: 11, kind: output, shape index: {}]
  %s12 = sld [smem:[#allocation0]]
  $region77: #{tpu_custom_call.1} parent=0
    _
  %s14 = ssub.s32 1, %s12
  %s15 = scalar_select 0, %s14, %s12
  $region1: #{tpu_custom_call.1} parent=0
    #allocation2 [shape = 'u8[4096]{0}', space=vmem, size = 0x1000, scoped, tag = 'output window, operand 0']
    #allocation3 [shape = 's32[2]{0}', space=sflag, size = 0x8, scoped, tag = 'scoped memory for tpu_custom_call.1']
    %16 = vsyncpa [#allocation3], 0
    %s17 = scalar_lea.sflag [#allocation3], 1
    %18 = vsyncpa %s17, 0
    loop: start=0, step=1, limit=6
    $region2: #{tpu_custom_call.1} parent=1 // loop_pre_header
      _
    $region3: #{tpu_custom_call.1} parent=1 // loop_header
      %s20 = sphi 0, %s24
      %p21 = scmp.ge.s32.totalorder %s20, 6
      %s30 = sphi 0, %s32
      %s33 = sphi 0, %s30
      %s34 = sphi 0, %s33
      %s50 = sphi 0, %s34
      %s54 = sphi 0, %s54
      %s56 = sphi 0, %s54
      %s57 = sphi 0, %s56
      %s71 = sphi 0, %s57
      %s75 = sphi 0, %s75
      %s77 = sphi 0, %s75
      %s78 = sphi 0, %s77
      %s92 = sphi 0, %s78
      %s96 = sphi 0, %s96
      %s98 = sphi 0, %s96
      %s99 = sphi 0, %s98
      %s113 = sphi 0, %s99
      %s117 = sphi 0, %s117
      %s119 = sphi 0, %s117
      %s120 = sphi 0, %s119
      %s134 = sphi 0, %s120
      %s138 = sphi 0, %s138
      %s140 = sphi 0, %s138
      %s141 = sphi 0, %s140
      %s155 = sphi 0, %s141
      %s159 = sphi 0, %s159
      %s161 = sphi 0, %s159
      %s162 = sphi 0, %s161
      %s176 = sphi 0, %s162
      %s180 = sphi 0, %s180
      %s182 = sphi 0, %s180
      %s183 = sphi 0, %s182
      %s197 = sphi 0, %s183
      %s201 = sphi 0, %s201
      %s203 = sphi 0, %s201
      %s204 = sphi 0, %s203
      %s218 = sphi 0, %s204
      %s222 = sphi 0, %s222
      %s224 = sphi 0, %s222
      %s225 = sphi 0, %s224
      %s239 = sphi 0, %s225
      %s243 = sphi 0, %s243
      %s245 = sphi 0, %s243
      %s246 = sphi 0, %s245
      %s260 = sphi 0, %s246
      %s266 = sphi 0, %s268
      %s269 = sphi 0, %s266
      %s270 = sphi 0, %s269
      %s286 = sphi 0, %s270
    $region4: #{tpu_custom_call.1} parent=1 // loop_header_branch
      %23 = sbr.rel (%p21) target = $region8
    $region5: #{tpu_custom_call.1} parent=1 // loop_body
      %s25 = ssub.s32 %s20, 1
      %s26 = ssub.s32 %s20, 2
      %s27 = sadd.s32 %s20, 1
      %s28 = ssub.s32 %s20, %s27
      %p29 = scmp.eq.s32.totalorder %s28, 0
      %s31 = sadd.s32 %s30, 1
      %s32 = scalar_select %p29, %s30, %s31
      %p35 = pneg %p29
      %p36 = scmp.eq.s32.totalorder %s20, 3
      %p37 = por %p35, %p36
      %p38 = scmp.ne.s32.totalorder %s30, %s33
      %p39 = scmp.eq.s32.totalorder %s20, 0
      %p40 = por %p38, %p39
      %p41 = scmp.ne.s32.totalorder %s30, %s33
      %p42 = scmp.eq.s32.totalorder %s25, 3
      %p43 = por %p41, %p42
      %p44 = scmp.ne.s32.totalorder %s33, %s34
      %p45 = scmp.eq.s32.totalorder %s25, 0
      %p46 = por %p44, %p45
      %p47 = scmp.ne.s32.totalorder %s33, %s34
      %p48 = scmp.eq.s32.totalorder %s26, 3
      %p49 = por %p47, %p48
      %p51 = scmp.ne.s32.totalorder %s34, %s50
      %p52 = scmp.eq.s32.totalorder %s26, 0
      %p53 = por %p51, %p52
      %s55 = sadd.s32 %s54, 1
      %p58 = scmp.eq.s32.totalorder %s20, 3
      %p59 = scmp.ne.s32.totalorder %s54, %s56
      %p60 = scmp.eq.s32.totalorder %s20, 0
      %p61 = por %p59, %p60
      %p62 = scmp.ne.s32.totalorder %s54, %s56
      %p63 = scmp.eq.s32.totalorder %s25, 3
      %p64 = por %p62, %p63
      %p65 = scmp.ne.s32.totalorder %s56, %s57
      %p66 = scmp.eq.s32.totalorder %s25, 0
      %p67 = por %p65, %p66
      %p68 = scmp.ne.s32.totalorder %s56, %s57
      %p69 = scmp.eq.s32.totalorder %s26, 3
      %p70 = por %p68, %p69
      %p72 = scmp.ne.s32.totalorder %s57, %s71
      %p73 = scmp.eq.s32.totalorder %s26, 0
      %p74 = por %p72, %p73
      %s76 = sadd.s32 %s75, 1
      %p79 = scmp.eq.s32.totalorder %s20, 3
      %p80 = scmp.ne.s32.totalorder %s75, %s77
      %p81 = scmp.eq.s32.totalorder %s20, 0
      %p82 = por %p80, %p81
      %p83 = scmp.ne.s32.totalorder %s75, %s77
      %p84 = scmp.eq.s32.totalorder %s25, 3
      %p85 = por %p83, %p84
      %p86 = scmp.ne.s32.totalorder %s77, %s78
      %p87 = scmp.eq.s32.totalorder %s25, 0
      %p88 = por %p86, %p87
      %p89 = scmp.ne.s32.totalorder %s77, %s78
      %p90 = scmp.eq.s32.totalorder %s26, 3
      %p91 = por %p89, %p90
      %p93 = scmp.ne.s32.totalorder %s78, %s92
      %p94 = scmp.eq.s32.totalorder %s26, 0
      %p95 = por %p93, %p94
      %s97 = sadd.s32 %s96, 1
      %p100 = scmp.eq.s32.totalorder %s20, 3
      %p101 = scmp.ne.s32.totalorder %s96, %s98
      %p102 = scmp.eq.s32.totalorder %s20, 0
      %p103 = por %p101, %p102
      %p104 = scmp.ne.s32.totalorder %s96, %s98
      %p105 = scmp.eq.s32.totalorder %s25, 3
      %p106 = por %p104, %p105
      %p107 = scmp.ne.s32.totalorder %s98, %s99
      %p108 = scmp.eq.s32.totalorder %s25, 0
      %p109 = por %p107, %p108
      %p110 = scmp.ne.s32.totalorder %s98, %s99
      %p111 = scmp.eq.s32.totalorder %s26, 3
      %p112 = por %p110, %p111
      %p114 = scmp.ne.s32.totalorder %s99, %s113
      %p115 = scmp.eq.s32.totalorder %s26, 0
      %p116 = por %p114, %p115
      %s118 = sadd.s32 %s117, 1
      %p121 = scmp.eq.s32.totalorder %s20, 3
      %p122 = scmp.ne.s32.totalorder %s117, %s119
      %p123 = scmp.eq.s32.totalorder %s20, 0
      %p124 = por %p122, %p123
      %p125 = scmp.ne.s32.totalorder %s117, %s119
      %p126 = scmp.eq.s32.totalorder %s25, 3
      %p127 = por %p125, %p126
      %p128 = scmp.ne.s32.totalorder %s119, %s120
      %p129 = scmp.eq.s32.totalorder %s25, 0
      %p130 = por %p128, %p129
      %p131 = scmp.ne.s32.totalorder %s119, %s120
      %p132 = scmp.eq.s32.totalorder %s26, 3
      %p133 = por %p131, %p132
      %p135 = scmp.ne.s32.totalorder %s120, %s134
      %p136 = scmp.eq.s32.totalorder %s26, 0
      %p137 = por %p135, %p136
      %s139 = sadd.s32 %s138, 1
      %p142 = scmp.eq.s32.totalorder %s20, 3
      %p143 = scmp.ne.s32.totalorder %s138, %s140
      %p144 = scmp.eq.s32.totalorder %s20, 0
      %p145 = por %p143, %p144
      %p146 = scmp.ne.s32.totalorder %s138, %s140
      %p147 = scmp.eq.s32.totalorder %s25, 3
      %p148 = por %p146, %p147
      %p149 = scmp.ne.s32.totalorder %s140, %s141
      %p150 = scmp.eq.s32.totalorder %s25, 0
      %p151 = por %p149, %p150
      %p152 = scmp.ne.s32.totalorder %s140, %s141
      %p153 = scmp.eq.s32.totalorder %s26, 3
      %p154 = por %p152, %p153
      %p156 = scmp.ne.s32.totalorder %s141, %s155
      %p157 = scmp.eq.s32.totalorder %s26, 0
      %p158 = por %p156, %p157
      %s160 = sadd.s32 %s159, 1
      %p163 = scmp.eq.s32.totalorder %s20, 3
      %p164 = scmp.ne.s32.totalorder %s159, %s161
      %p165 = scmp.eq.s32.totalorder %s20, 0
      %p166 = por %p164, %p165
      %p167 = scmp.ne.s32.totalorder %s159, %s161
      %p168 = scmp.eq.s32.totalorder %s25, 3
      %p169 = por %p167, %p168
      %p170 = scmp.ne.s32.totalorder %s161, %s162
      %p171 = scmp.eq.s32.totalorder %s25, 0
      %p172 = por %p170, %p171
      %p173 = scmp.ne.s32.totalorder %s161, %s162
      %p174 = scmp.eq.s32.totalorder %s26, 3
      %p175 = por %p173, %p174
      %p177 = scmp.ne.s32.totalorder %s162, %s176
      %p178 = scmp.eq.s32.totalorder %s26, 0
      %p179 = por %p177, %p178
      %s181 = sadd.s32 %s180, 1
      %p184 = scmp.eq.s32.totalorder %s20, 3
      %p185 = scmp.ne.s32.totalorder %s180, %s182
      %p186 = scmp.eq.s32.totalorder %s20, 0
      %p187 = por %p185, %p186
      %p188 = scmp.ne.s32.totalorder %s180, %s182
      %p189 = scmp.eq.s32.totalorder %s25, 3
      %p190 = por %p188, %p189
      %p191 = scmp.ne.s32.totalorder %s182, %s183
      %p192 = scmp.eq.s32.totalorder %s25, 0
      %p193 = por %p191, %p192
      %p194 = scmp.ne.s32.totalorder %s182, %s183
      %p195 = scmp.eq.s32.totalorder %s26, 3
      %p196 = por %p194, %p195
      %p198 = scmp.ne.s32.totalorder %s183, %s197
      %p199 = scmp.eq.s32.totalorder %s26, 0
      %p200 = por %p198, %p199
      %s202 = sadd.s32 %s201, 1
      %p205 = scmp.eq.s32.totalorder %s20, 3
      %p206 = scmp.ne.s32.totalorder %s201, %s203
      %p207 = scmp.eq.s32.totalorder %s20, 0
      %p208 = por %p206, %p207
      %p209 = scmp.ne.s32.totalorder %s201, %s203
      %p210 = scmp.eq.s32.totalorder %s25, 3
      %p211 = por %p209, %p210
      %p212 = scmp.ne.s32.totalorder %s203, %s204
      %p213 = scmp.eq.s32.totalorder %s25, 0
      %p214 = por %p212, %p213
      %p215 = scmp.ne.s32.totalorder %s203, %s204
      %p216 = scmp.eq.s32.totalorder %s26, 3
      %p217 = por %p215, %p216
      %p219 = scmp.ne.s32.totalorder %s204, %s218
      %p220 = scmp.eq.s32.totalorder %s26, 0
      %p221 = por %p219, %p220
      %s223 = sadd.s32 %s222, 1
      %p226 = scmp.eq.s32.totalorder %s20, 3
      %p227 = scmp.ne.s32.totalorder %s222, %s224
      %p228 = scmp.eq.s32.totalorder %s20, 0
      %p229 = por %p227, %p228
      %p230 = scmp.ne.s32.totalorder %s222, %s224
      %p231 = scmp.eq.s32.totalorder %s25, 3
      %p232 = por %p230, %p231
      %p233 = scmp.ne.s32.totalorder %s224, %s225
      %p234 = scmp.eq.s32.totalorder %s25, 0
      %p235 = por %p233, %p234
      %p236 = scmp.ne.s32.totalorder %s224, %s225
      %p237 = scmp.eq.s32.totalorder %s26, 3
      %p238 = por %p236, %p237
      %p240 = scmp.ne.s32.totalorder %s225, %s239
      %p241 = scmp.eq.s32.totalorder %s26, 0
      %p242 = por %p240, %p241
      %s244 = sadd.s32 %s243, 1
      %p247 = scmp.eq.s32.totalorder %s20, 3
      %p248 = scmp.ne.s32.totalorder %s243, %s245
      %p249 = scmp.eq.s32.totalorder %s20, 0
      %p250 = por %p248, %p249
      %p251 = scmp.ne.s32.totalorder %s243, %s245
      %p252 = scmp.eq.s32.totalorder %s25, 3
      %p253 = por %p251, %p252
      %p254 = scmp.ne.s32.totalorder %s245, %s246
      %p255 = scmp.eq.s32.totalorder %s25, 0
      %p256 = por %p254, %p255
      %p257 = scmp.ne.s32.totalorder %s245, %s246
      %p258 = scmp.eq.s32.totalorder %s26, 3
      %p259 = por %p257, %p258
      %p261 = scmp.ne.s32.totalorder %s246, %s260
      %p262 = scmp.eq.s32.totalorder %s26, 0
      %p263 = por %p261, %p262
      %s264 = ssub.s32 %s20, %s27
      %p265 = scmp.eq.s32.totalorder %s264, 0
      %s267 = sadd.s32 %s266, 1
      %s268 = scalar_select %p265, %s266, %s267
      %p271 = pneg %p265
      %p272 = scmp.eq.s32.totalorder %s20, 3
      %p273 = por %p271, %p272
      %p274 = scmp.ne.s32.totalorder %s266, %s269
      %p275 = scmp.eq.s32.totalorder %s20, 0
      %p276 = por %p274, %p275
      %p277 = scmp.ne.s32.totalorder %s266, %s269
      %p278 = scmp.eq.s32.totalorder %s25, 3
      %p279 = por %p277, %p278
      %p280 = scmp.ne.s32.totalorder %s269, %s270
      %p281 = scmp.eq.s32.totalorder %s25, 0
      %p282 = por %p280, %p281
      %p283 = scmp.ne.s32.totalorder %s269, %s270
      %p284 = scmp.eq.s32.totalorder %s26, 3
      %p285 = por %p283, %p284
      %p287 = scmp.ne.s32.totalorder %s270, %s286
      %p288 = scmp.eq.s32.totalorder %s26, 0
      %p289 = por %p287, %p288
      %p290 = scmp.le.s32.totalorder 1, %s20
      %p291 = scmp.lt.s32.totalorder %s20, 5
      %p292 = pnand %p290, %p291
      %p293 = pneg %p292
      // Predicated region
      $region9: #{tpu_custom_call.1} parent=5 // pred_check
        _
      $region10: #{tpu_custom_call.1} parent=5 // pred_check_branch
        %295 = sbr.rel (%p292) target = $region12
      $region11: #{tpu_custom_call.1} parent=5 // pred_region
        %s296 = ssub.s32 %s20, 1
        // Predicated region
        $region13: #{tpu_custom_call.1} parent=11 // pred_check
          %p297 = pneg %p67
        $region14: #{tpu_custom_call.1} parent=11 // pred_check_branch
          %299 = sbr.rel (%p297) target = $region16
        $region15: #{tpu_custom_call.1} parent=11 // pred_region
          _
        $region16: #{tpu_custom_call.1} parent=11 // pred_fallthru
          _
        // Predicated region
        $region17: #{tpu_custom_call.1} parent=11 // pred_check
          %p300 = pneg %p88
        $region18: #{tpu_custom_call.1} parent=11 // pred_check_branch
          %302 = sbr.rel (%p300) target = $region20
        $region19: #{tpu_custom_call.1} parent=11 // pred_region
          _
        $region20: #{tpu_custom_call.1} parent=11 // pred_fallthru
          _
        // Predicated region
        $region21: #{tpu_custom_call.1} parent=11 // pred_check
          %p303 = pneg %p109
        $region22: #{tpu_custom_call.1} parent=11 // pred_check_branch
          %305 = sbr.rel (%p303) target = $region24
        $region23: #{tpu_custom_call.1} parent=11 // pred_region
          _
        $region24: #{tpu_custom_call.1} parent=11 // pred_fallthru
          _
        // Predicated region
        $region25: #{tpu_custom_call.1} parent=11 // pred_check
          %p306 = pneg %p130
        $region26: #{tpu_custom_call.1} parent=11 // pred_check_branch
          %308 = sbr.rel (%p306) target = $region28
        $region27: #{tpu_custom_call.1} parent=11 // pred_region
          _
        $region28: #{tpu_custom_call.1} parent=11 // pred_fallthru
          _
        // Predicated region
        $region29: #{tpu_custom_call.1} parent=11 // pred_check
          %p309 = pneg %p151
        $region30: #{tpu_custom_call.1} parent=11 // pred_check_branch
          %311 = sbr.rel (%p309) target = $region32
        $region31: #{tpu_custom_call.1} parent=11 // pred_region
          _
        $region32: #{tpu_custom_call.1} parent=11 // pred_fallthru
          _
        // Predicated region
        $region33: #{tpu_custom_call.1} parent=11 // pred_check
          %p312 = pneg %p172
        $region34: #{tpu_custom_call.1} parent=11 // pred_check_branch
          %314 = sbr.rel (%p312) target = $region36
        $region35: #{tpu_custom_call.1} parent=11 // pred_region
          _
        $region36: #{tpu_custom_call.1} parent=11 // pred_fallthru
          _
        // Predicated region
        $region37: #{tpu_custom_call.1} parent=11 // pred_check
          %p315 = pneg %p193
        $region38: #{tpu_custom_call.1} parent=11 // pred_check_branch
          %317 = sbr.rel (%p315) target = $region40
        $region39: #{tpu_custom_call.1} parent=11 // pred_region
          _
        $region40: #{tpu_custom_call.1} parent=11 // pred_fallthru
          _
        // Predicated region
        $region41: #{tpu_custom_call.1} parent=11 // pred_check
          %p318 = pneg %p214
        $region42: #{tpu_custom_call.1} parent=11 // pred_check_branch
          %320 = sbr.rel (%p318) target = $region44
        $region43: #{tpu_custom_call.1} parent=11 // pred_region
          _
        $region44: #{tpu_custom_call.1} parent=11 // pred_fallthru
          _
        // Predicated region
        $region45: #{tpu_custom_call.1} parent=11 // pred_check
          %p321 = pneg %p235
        $region46: #{tpu_custom_call.1} parent=11 // pred_check_branch
          %323 = sbr.rel (%p321) target = $region48
        $region47: #{tpu_custom_call.1} parent=11 // pred_region
          _
        $region48: #{tpu_custom_call.1} parent=11 // pred_fallthru
          _
        // Predicated region
        $region49: #{tpu_custom_call.1} parent=11 // pred_check
          %p324 = pneg %p256
        $region50: #{tpu_custom_call.1} parent=11 // pred_check_branch
          %326 = sbr.rel (%p324) target = $region52
        $region51: #{tpu_custom_call.1} parent=11 // pred_region
          _
        $region52: #{tpu_custom_call.1} parent=11 // pred_fallthru
          _
      $region12: #{tpu_custom_call.1} parent=5 // pred_fallthru
        _
      %p327 = scmp.lt.s32.totalorder %s20, 4
      // Predicated region
      $region53: #{tpu_custom_call.1} parent=5 // pred_check
        %p328 = pneg %p327
      $region54: #{tpu_custom_call.1} parent=5 // pred_check_branch
        %330 = sbr.rel (%p328) target = $region56
      $region55: #{tpu_custom_call.1} parent=5 // pred_region
        // Predicated region
        $region57: #{tpu_custom_call.1} parent=55 // pred_check
          %p331 = pneg %p40
        $region58: #{tpu_custom_call.1} parent=55 // pred_check_branch
          %333 = sbr.rel (%p331) target = $region60
        $region59: #{tpu_custom_call.1} parent=55 // pred_region
          %p334 = scmp.lt.s32.totalorder %s20, 3
          %s335 = scalar_select %p334, %s20, 3
          %s336 = smul.addr %s335, 2
          %s337 = scalar_lea.vmem %s0, %s336
        $region60: #{tpu_custom_call.1} parent=55 // pred_fallthru
          _
      $region56: #{tpu_custom_call.1} parent=5 // pred_fallthru
        _
      %p338 = scmp.le.s32.totalorder 1, %s20
      %p339 = scmp.lt.s32.totalorder %s20, 5
      %p340 = pnand %p338, %p339
      %p341 = pneg %p340
      // Predicated region
      $region61: #{tpu_custom_call.1} parent=5 // pred_check
        _
      $region62: #{tpu_custom_call.1} parent=5 // pred_check_branch
        %343 = sbr.rel (%p340) target = $region64
      $region63: #{tpu_custom_call.1} parent=5 // pred_region
        %s344 = ssub.s32 %s20, 1
        %p345 = scmp.lt.s32.totalorder %s25, 3
        %s346 = scalar_select %p345, %s25, 3
        %s347 = smul.addr %s346, 2
        %s348 = scalar_lea.vmem %s0, %s347
        %p349 = pneg %p46
        %p350 = pneg %p43
        %p351 = pneg %p67
        %p352 = pneg %p64
        %p353 = pneg %p88
        %p354 = pneg %p85
        %p355 = pneg %p109
        %p356 = pneg %p106
        %p357 = pneg %p130
        %p358 = pneg %p127
        %p359 = pneg %p151
        %p360 = pneg %p148
        %p361 = pneg %p172
        %p362 = pneg %p169
        %p363 = pneg %p193
        %p364 = pneg %p190
        %p365 = pneg %p214
        %p366 = pneg %p211
        %p367 = pneg %p235
        %p368 = pneg %p232
        %p369 = pneg %p256
        %p370 = pneg %p253
        %p371 = pneg %p282
        %p372 = pneg %p279
        %s373 = sand.u32 %s269, 1
        %s374 = scalar_lea.sflag [#allocation3], %s373
        %s375 = sand.u32 %s269, 1
        %s376 = smul.addr %s375, 4
        %s377 = scalar_lea.vmem [#allocation2], %s376
        %p378 = scmp.lt.s32.totalorder %s25, 3
        %s379 = scalar_select %p378, %s25, 3
        %s380 = smul.addr %s379, 2
        %s381 = scalar_lea.vmem %s0, %s380
        %v387 = vld [vmem:[%s381] sm:$0x3]
        %v388 = vld [vmem:[%s1] sm:$0xff]
        %v389 = vld [vmem:[%s1 + $0x8] sm:$0xff]
        %v390 = vld [vmem:[%s1 + $0x10] sm:$0xff]
        %v391 = vld [vmem:[%s1 + $0x18] sm:$0xff]
        %v392 = vld [vmem:[%s2] sm:$0xff]
        %v393 = vld [vmem:[%s2 + $0x8] sm:$0xff]
        %v394 = vld [vmem:[%s2 + $0x10] sm:$0xff]
        %v395 = vld [vmem:[%s2 + $0x18] sm:$0xff]
        %397 = vset.pattern.permute.xlu0 0
        %398 = vperm.xlu0 %397, %v388
        %v399 = vpop.permute.xlu0 %398
        %402 = vset.pattern.permute.xlu0 0
        %403 = vperm.xlu0 %402, %v389
        %v404 = vpop.permute.xlu0 %403
        %407 = vset.pattern.permute.xlu0 0
        %408 = vperm.xlu0 %407, %v390
        %v409 = vpop.permute.xlu0 %408
        %412 = vset.pattern.permute.xlu0 0
        %413 = vperm.xlu0 %412, %v391
        %v414 = vpop.permute.xlu0 %413
        %v416 = vlaneseq
        %v417 = vshrl.u32 %v416, 7
        %v418 = vsub.s32 0, %v417
        %v419 = vrot.slane %v387, %v418
        %v420 = vmul.f32 %v399, %v419
        %v421 = vmul.f32 %v404, %v419
        %v422 = vmul.f32 %v409, %v419
        %v423 = vmul.f32 %v414, %v419
        %425 = vset.pattern.permute.xlu0 0
        %426 = vperm.xlu0 %425, %v392
        %v427 = vpop.permute.xlu0 %426
        %430 = vset.pattern.permute.xlu0 0
        %431 = vperm.xlu0 %430, %v393
        %v432 = vpop.permute.xlu0 %431
        %435 = vset.pattern.permute.xlu0 0
        %436 = vperm.xlu0 %435, %v394
        %v437 = vpop.permute.xlu0 %436
        %440 = vset.pattern.permute.xlu0 0
        %441 = vperm.xlu0 %440, %v395
        %v442 = vpop.permute.xlu0 %441
        %v444 = vadd.f32 %v427, %v420
        %v445 = vadd.f32 %v432, %v421
        %v446 = vadd.f32 %v437, %v422
        %v447 = vadd.f32 %v442, %v423
        %448 = vset.pattern.permute.xlu0 1
        %449 = vperm.xlu0 %448, %v388
        %v450 = vpop.permute.xlu0 %449
        %452 = vset.pattern.permute.xlu0 1
        %453 = vperm.xlu0 %452, %v389
        %v454 = vpop.permute.xlu0 %453
        %456 = vset.pattern.permute.xlu0 1
        %457 = vperm.xlu0 %456, %v390
        %v458 = vpop.permute.xlu0 %457
        %460 = vset.pattern.permute.xlu0 1
        %461 = vperm.xlu0 %460, %v391
        %v462 = vpop.permute.xlu0 %461
        %v464 = vlaneseq
        %v465 = vshrl.u32 %v464, 7
        %v466 = vsub.s32 1, %v465
        %v467 = vrot.slane %v387, %v466
        %v468 = vmul.f32 %v450, %v467
        %v469 = vmul.f32 %v454, %v467
        %v470 = vmul.f32 %v458, %v467
        %v471 = vmul.f32 %v462, %v467
        %v472 = vadd.f32 %v444, %v468
        %v473 = vadd.f32 %v445, %v469
        %v474 = vadd.f32 %v446, %v470
        %v475 = vadd.f32 %v447, %v471
        %v476 = vand.u32 2147483647, %v472
        %vm477 = vcmp.le.f32.partialorder %v476, 0.7853982
        %vm478 = vcmp.lt.s32.totalorder %v472, 0
        %v479 = vand.u32 %v472, 2139095040
        %v480 = vshrl.u32 %v479, 23
        %v481 = vsub.s32 %v480, 127
        %v482 = vand.u32 2147483647, %v472
        %v483 = vand.u32 %v482, 8388607
        %v484 = vor.u32 %v483, 8388608
        %v485 = vsub.s32 0, %v484
        %v486 = vadd.s32 %v481, 1
        %vm487 = vcmp.gt.s32.totalorder %v486, 0
        %v488 = vsel %vm487, %v486, 0
        %v489 = vshrl.u32 %v488, 5
        %v490 = vand.u32 %v488, 31
        %v491 = vsub.s32 32, %v490
        %v492 = vshrl.u32 683565275, %v491
        %v493 = vshll.u32 683565275, %v490
        %v494 = vshrl.u32 2475754826, %v491
        %v495 = vor.u32 %v493, %v494
        %v496 = vshll.u32 2475754826, %v490
        %v497 = vshrl.u32 2131351028, %v491
        %v498 = vor.u32 %v496, %v497
        %v499 = vshll.u32 2131351028, %v490
        %v500 = vshrl.u32 2102212464, %v491
        %v501 = vor.u32 %v499, %v500
        %v502 = vshll.u32 2102212464, %v490
        %v503 = vshrl.u32 920167782, %v491
        %v504 = vor.u32 %v502, %v503
        %v505 = vshll.u32 920167782, %v490
        %v506 = vshrl.u32 1326507024, %v491
        %v507 = vor.u32 %v505, %v506
        %vm508 = vcmp.lt.s32.totalorder %v489, 1
        %vm509 = vcmp.lt.s32.totalorder %v489, 2
        %vm510 = vcmp.lt.s32.totalorder %v489, 3
        %vm511 = vcmp.lt.s32.totalorder %v489, 4
        %v512 = vsel %vm508, %v492, %v495
        %v513 = vsel %vm511, %v501, 2102212464
        %v514 = vsel %vm510, %v498, %v513
        %v515 = vsel %vm509, %v512, %v514
        %v516 = vsel %vm508, %v495, %v498
        %v517 = vsel %vm511, %v504, 920167782
        %v518 = vsel %vm510, %v501, %v517
        %v519 = vsel %vm509, %v516, %v518
        %v520 = vsel %vm508, %v498, %v501
        %v521 = vsel %vm511, %v507, 1326507024
        %v522 = vsel %vm510, %v504, %v521
        %v523 = vsel %vm509, %v520, %v522
        %v524 = vshll.u32 %v484, 8
        %v525 = vmul.u32.u64.compose %v524, %v523
        %v526 = vextract.low.u32 %v525
        %v527 = vextract.high.u32 %v525
        %v528 = vmul.u32.u64.compose %v524, %v519
        %v529 = vextract.low.u32 %v528
        %v530 = vextract.high.u32 %v528
        %v531 = vmul.u32 %v524, %v515
        %v532 = vadd.s32 %v527, %v529
        %vm533 = vc.u32 %v527, %v529
        %v534 = vadd.s32 %v530, 1
        %v535 = vsel %vm533, %v534, %v530
        %v536 = vadd.s32 %v531, %v535
        %v537 = vadd.s32 %v536, 536870912
        %v538 = vshrl.u32 %v537, 30
        %v539 = vshll.u32 %v538, 30
        %v540 = vsub.s32 %v536, %v539
        %vm541 = vcmp.lt.s32.totalorder %v540, 0
        %v542 = vsub.s32 0, %v540
        %v543 = vsel %vm541, %v542, %v540
        %v544 = vclz %v543
        %v545 = vsub.s32 %v544, 2
        %vm546 = vcmp.gt.s32.totalorder 0, %v545
        %v547 = vsel %vm546, 0, %v545
        %v548 = vsub.s32 32, %v547
        %v549 = vshll.u32 %v540, %v547
        %v550 = vshrl.u32 %v532, %v548
        %v551 = vor.u32 %v549, %v550
        %v552 = vsub.s32 4294967266, %v547
        %v553 = vadd.s32 %v552, 127
        %v554 = vshll.u32 %v553, 23
        %v555 = vor.u32 4788187, %v554
        %v556 = vand.u32 2147483647, %v555
        %v558 = vcvt.s32.f32 %v551
        %v559 = vmul.f32 %v558, %v556
        %v560 = vxor.u32 %v559, 2147483648
        %v561 = vsel %vm478, %v560, %v559
        %v562 = vsub.s32 4, %v538
        %v563 = vsel %vm478, %v562, %v538
        %v564 = vsel %vm477, %v472, %v561
        %v565 = vsel %vm477, 0, %v563
        %v566 = vcosq.f32.pop %v564
        %v567 = vsinq.f32.pop %v564
        %vm568 = vweird.f32 %v472
        %v569 = vadd.s32 %v565, 3
        %v570 = vand.u32 %v569, 3
        %vm571 = vcmp.lt.s32.totalorder %v570, 2
        %vm572 = vcmp.eq.s32.totalorder %v570, 0
        %v573 = vxor.u32 %v567, 2147483648
        %v574 = vsel %vm572, %v566, %v573
        %vm575 = vcmp.eq.s32.totalorder %v570, 2
        %v576 = vxor.u32 %v566, 2147483648
        %v577 = vsel %vm575, %v576, %v567
        %v578 = vsel %vm571, %v574, %v577
        %v579 = vsel %vm568, nan, %v578
        %v580 = vand.u32 2147483647, %v473
        %vm581 = vcmp.le.f32.partialorder %v580, 0.7853982
        %vm582 = vcmp.lt.s32.totalorder %v473, 0
        %v583 = vand.u32 %v473, 2139095040
        %v584 = vshrl.u32 %v583, 23
        %v585 = vsub.s32 %v584, 127
        %v586 = vand.u32 2147483647, %v473
        %v587 = vand.u32 %v586, 8388607
        %v588 = vor.u32 %v587, 8388608
        %v589 = vsub.s32 0, %v588
        %v590 = vadd.s32 %v585, 1
        %vm591 = vcmp.gt.s32.totalorder %v590, 0
        %v592 = vsel %vm591, %v590, 0
        %v593 = vshrl.u32 %v592, 5
        %v594 = vand.u32 %v592, 31
        %v595 = vsub.s32 32, %v594
        %v596 = vshrl.u32 683565275, %v595
        %v597 = vshll.u32 683565275, %v594
        %v598 = vshrl.u32 2475754826, %v595
        %v599 = vor.u32 %v597, %v598
        %v600 = vshll.u32 2475754826, %v594
        %v601 = vshrl.u32 2131351028, %v595
        %v602 = vor.u32 %v600, %v601
        %v603 = vshll.u32 2131351028, %v594
        %v604 = vshrl.u32 2102212464, %v595
        %v605 = vor.u32 %v603, %v604
        %v606 = vshll.u32 2102212464, %v594
        %v607 = vshrl.u32 920167782, %v595
        %v608 = vor.u32 %v606, %v607
        %v609 = vshll.u32 920167782, %v594
        %v610 = vshrl.u32 1326507024, %v595
        %v611 = vor.u32 %v609, %v610
        %vm612 = vcmp.lt.s32.totalorder %v593, 1
        %vm613 = vcmp.lt.s32.totalorder %v593, 2
        %vm614 = vcmp.lt.s32.totalorder %v593, 3
        %vm615 = vcmp.lt.s32.totalorder %v593, 4
        %v616 = vsel %vm612, %v596, %v599
        %v617 = vsel %vm615, %v605, 2102212464
        %v618 = vsel %vm614, %v602, %v617
        %v619 = vsel %vm613, %v616, %v618
        %v620 = vsel %vm612, %v599, %v602
        %v621 = vsel %vm615, %v608, 920167782
        %v622 = vsel %vm614, %v605, %v621
        %v623 = vsel %vm613, %v620, %v622
        %v624 = vsel %vm612, %v602, %v605
        %v625 = vsel %vm615, %v611, 1326507024
        %v626 = vsel %vm614, %v608, %v625
        %v627 = vsel %vm613, %v624, %v626
        %v628 = vshll.u32 %v588, 8
        %v629 = vmul.u32.u64.compose %v628, %v627
        %v630 = vextract.low.u32 %v629
        %v631 = vextract.high.u32 %v629
        %v632 = vmul.u32.u64.compose %v628, %v623
        %v633 = vextract.low.u32 %v632
        %v634 = vextract.high.u32 %v632
        %v635 = vmul.u32 %v628, %v619
        %v636 = vadd.s32 %v631, %v633
        %vm637 = vc.u32 %v631, %v633
        %v638 = vadd.s32 %v634, 1
        %v639 = vsel %vm637, %v638, %v634
        %v640 = vadd.s32 %v635, %v639
        %v641 = vadd.s32 %v640, 536870912
        %v642 = vshrl.u32 %v641, 30
        %v643 = vshll.u32 %v642, 30
        %v644 = vsub.s32 %v640, %v643
        %vm645 = vcmp.lt.s32.totalorder %v644, 0
        %v646 = vsub.s32 0, %v644
        %v647 = vsel %vm645, %v646, %v644
        %v648 = vclz %v647
        %v649 = vsub.s32 %v648, 2
        %vm650 = vcmp.gt.s32.totalorder 0, %v649
        %v651 = vsel %vm650, 0, %v649
        %v652 = vsub.s32 32, %v651
        %v653 = vshll.u32 %v644, %v651
        %v654 = vshrl.u32 %v636, %v652
        %v655 = vor.u32 %v653, %v654
        %v656 = vsub.s32 4294967266, %v651
        %v657 = vadd.s32 %v656, 127
        %v658 = vshll.u32 %v657, 23
        %v659 = vor.u32 4788187, %v658
        %v660 = vand.u32 2147483647, %v659
        %v662 = vcvt.s32.f32 %v655
        %v663 = vmul.f32 %v662, %v660
        %v664 = vxor.u32 %v663, 2147483648
        %v665 = vsel %vm582, %v664, %v663
        %v666 = vsub.s32 4, %v642
        %v667 = vsel %vm582, %v666, %v642
        %v668 = vsel %vm581, %v473, %v665
        %v669 = vsel %vm581, 0, %v667
        %v670 = vcosq.f32.pop %v668
        %v671 = vsinq.f32.pop %v668
        %vm672 = vweird.f32 %v473
        %v673 = vadd.s32 %v669, 3
        %v674 = vand.u32 %v673, 3
        %vm675 = vcmp.lt.s32.totalorder %v674, 2
        %vm676 = vcmp.eq.s32.totalorder %v674, 0
        %v677 = vxor.u32 %v671, 2147483648
        %v678 = vsel %vm676, %v670, %v677
        %vm679 = vcmp.eq.s32.totalorder %v674, 2
        %v680 = vxor.u32 %v670, 2147483648
        %v681 = vsel %vm679, %v680, %v671
        %v682 = vsel %vm675, %v678, %v681
        %v683 = vsel %vm672, nan, %v682
        %v684 = vand.u32 2147483647, %v474
        %vm685 = vcmp.le.f32.partialorder %v684, 0.7853982
        %vm686 = vcmp.lt.s32.totalorder %v474, 0
        %v687 = vand.u32 %v474, 2139095040
        %v688 = vshrl.u32 %v687, 23
        %v689 = vsub.s32 %v688, 127
        %v690 = vand.u32 2147483647, %v474
        %v691 = vand.u32 %v690, 8388607
        %v692 = vor.u32 %v691, 8388608
        %v693 = vsub.s32 0, %v692
        %v694 = vadd.s32 %v689, 1
        %vm695 = vcmp.gt.s32.totalorder %v694, 0
        %v696 = vsel %vm695, %v694, 0
        %v697 = vshrl.u32 %v696, 5
        %v698 = vand.u32 %v696, 31
        %v699 = vsub.s32 32, %v698
        %v700 = vshrl.u32 683565275, %v699
        %v701 = vshll.u32 683565275, %v698
        %v702 = vshrl.u32 2475754826, %v699
        %v703 = vor.u32 %v701, %v702
        %v704 = vshll.u32 2475754826, %v698
        %v705 = vshrl.u32 2131351028, %v699
        %v706 = vor.u32 %v704, %v705
        %v707 = vshll.u32 2131351028, %v698
        %v708 = vshrl.u32 2102212464, %v699
        %v709 = vor.u32 %v707, %v708
        %v710 = vshll.u32 2102212464, %v698
        %v711 = vshrl.u32 920167782, %v699
        %v712 = vor.u32 %v710, %v711
        %v713 = vshll.u32 920167782, %v698
        %v714 = vshrl.u32 1326507024, %v699
        %v715 = vor.u32 %v713, %v714
        %vm716 = vcmp.lt.s32.totalorder %v697, 1
        %vm717 = vcmp.lt.s32.totalorder %v697, 2
        %vm718 = vcmp.lt.s32.totalorder %v697, 3
        %vm719 = vcmp.lt.s32.totalorder %v697, 4
        %v720 = vsel %vm716, %v700, %v703
        %v721 = vsel %vm719, %v709, 2102212464
        %v722 = vsel %vm718, %v706, %v721
        %v723 = vsel %vm717, %v720, %v722
        %v724 = vsel %vm716, %v703, %v706
        %v725 = vsel %vm719, %v712, 920167782
        %v726 = vsel %vm718, %v709, %v725
        %v727 = vsel %vm717, %v724, %v726
        %v728 = vsel %vm716, %v706, %v709
        %v729 = vsel %vm719, %v715, 1326507024
        %v730 = vsel %vm718, %v712, %v729
        %v731 = vsel %vm717, %v728, %v730
        %v732 = vshll.u32 %v692, 8
        %v733 = vmul.u32.u64.compose %v732, %v731
        %v734 = vextract.low.u32 %v733
        %v735 = vextract.high.u32 %v733
        %v736 = vmul.u32.u64.compose %v732, %v727
        %v737 = vextract.low.u32 %v736
        %v738 = vextract.high.u32 %v736
        %v739 = vmul.u32 %v732, %v723
        %v740 = vadd.s32 %v735, %v737
        %vm741 = vc.u32 %v735, %v737
        %v742 = vadd.s32 %v738, 1
        %v743 = vsel %vm741, %v742, %v738
        %v744 = vadd.s32 %v739, %v743
        %v745 = vadd.s32 %v744, 536870912
        %v746 = vshrl.u32 %v745, 30
        %v747 = vshll.u32 %v746, 30
        %v748 = vsub.s32 %v744, %v747
        %vm749 = vcmp.lt.s32.totalorder %v748, 0
        %v750 = vsub.s32 0, %v748
        %v751 = vsel %vm749, %v750, %v748
        %v752 = vclz %v751
        %v753 = vsub.s32 %v752, 2
        %vm754 = vcmp.gt.s32.totalorder 0, %v753
        %v755 = vsel %vm754, 0, %v753
        %v756 = vsub.s32 32, %v755
        %v757 = vshll.u32 %v748, %v755
        %v758 = vshrl.u32 %v740, %v756
        %v759 = vor.u32 %v757, %v758
        %v760 = vsub.s32 4294967266, %v755
        %v761 = vadd.s32 %v760, 127
        %v762 = vshll.u32 %v761, 23
        %v763 = vor.u32 4788187, %v762
        %v764 = vand.u32 2147483647, %v763
        %v766 = vcvt.s32.f32 %v759
        %v767 = vmul.f32 %v766, %v764
        %v768 = vxor.u32 %v767, 2147483648
        %v769 = vsel %vm686, %v768, %v767
        %v770 = vsub.s32 4, %v746
        %v771 = vsel %vm686, %v770, %v746
        %v772 = vsel %vm685, %v474, %v769
        %v773 = vsel %vm685, 0, %v771
        %v774 = vcosq.f32.pop %v772
        %v775 = vsinq.f32.pop %v772
        %vm776 = vweird.f32 %v474
        %v777 = vadd.s32 %v773, 3
        %v778 = vand.u32 %v777, 3
        %vm779 = vcmp.lt.s32.totalorder %v778, 2
        %vm780 = vcmp.eq.s32.totalorder %v778, 0
        %v781 = vxor.u32 %v775, 2147483648
        %v782 = vsel %vm780, %v774, %v781
        %vm783 = vcmp.eq.s32.totalorder %v778, 2
        %v784 = vxor.u32 %v774, 2147483648
        %v785 = vsel %vm783, %v784, %v775
        %v786 = vsel %vm779, %v782, %v785
        %v787 = vsel %vm776, nan, %v786
        %v788 = vand.u32 2147483647, %v475
        %vm789 = vcmp.le.f32.partialorder %v788, 0.7853982
        %vm790 = vcmp.lt.s32.totalorder %v475, 0
        %v791 = vand.u32 %v475, 2139095040
        %v792 = vshrl.u32 %v791, 23
        %v793 = vsub.s32 %v792, 127
        %v794 = vand.u32 2147483647, %v475
        %v795 = vand.u32 %v794, 8388607
        %v796 = vor.u32 %v795, 8388608
        %v797 = vsub.s32 0, %v796
        %v798 = vadd.s32 %v793, 1
        %vm799 = vcmp.gt.s32.totalorder %v798, 0
        %v800 = vsel %vm799, %v798, 0
        %v801 = vshrl.u32 %v800, 5
        %v802 = vand.u32 %v800, 31
        %v803 = vsub.s32 32, %v802
        %v804 = vshrl.u32 683565275, %v803
        %v805 = vshll.u32 683565275, %v802
        %v806 = vshrl.u32 2475754826, %v803
        %v807 = vor.u32 %v805, %v806
        %v808 = vshll.u32 2475754826, %v802
        %v809 = vshrl.u32 2131351028, %v803
        %v810 = vor.u32 %v808, %v809
        %v811 = vshll.u32 2131351028, %v802
        %v812 = vshrl.u32 2102212464, %v803
        %v813 = vor.u32 %v811, %v812
        %v814 = vshll.u32 2102212464, %v802
        %v815 = vshrl.u32 920167782, %v803
        %v816 = vor.u32 %v814, %v815
        %v817 = vshll.u32 920167782, %v802
        %v818 = vshrl.u32 1326507024, %v803
        %v819 = vor.u32 %v817, %v818
        %vm820 = vcmp.lt.s32.totalorder %v801, 1
        %vm821 = vcmp.lt.s32.totalorder %v801, 2
        %vm822 = vcmp.lt.s32.totalorder %v801, 3
        %vm823 = vcmp.lt.s32.totalorder %v801, 4
        %v824 = vsel %vm820, %v804, %v807
        %v825 = vsel %vm823, %v813, 2102212464
        %v826 = vsel %vm822, %v810, %v825
        %v827 = vsel %vm821, %v824, %v826
        %v828 = vsel %vm820, %v807, %v810
        %v829 = vsel %vm823, %v816, 920167782
        %v830 = vsel %vm822, %v813, %v829
        %v831 = vsel %vm821, %v828, %v830
        %v832 = vsel %vm820, %v810, %v813
        %v833 = vsel %vm823, %v819, 1326507024
        %v834 = vsel %vm822, %v816, %v833
        %v835 = vsel %vm821, %v832, %v834
        %v836 = vshll.u32 %v796, 8
        %v837 = vmul.u32.u64.compose %v836, %v835
        %v838 = vextract.low.u32 %v837
        %v839 = vextract.high.u32 %v837
        %v840 = vmul.u32.u64.compose %v836, %v831
        %v841 = vextract.low.u32 %v840
        %v842 = vextract.high.u32 %v840
        %v843 = vmul.u32 %v836, %v827
        %v844 = vadd.s32 %v839, %v841
        %vm845 = vc.u32 %v839, %v841
        %v846 = vadd.s32 %v842, 1
        %v847 = vsel %vm845, %v846, %v842
        %v848 = vadd.s32 %v843, %v847
        %v849 = vadd.s32 %v848, 536870912
        %v850 = vshrl.u32 %v849, 30
        %v851 = vshll.u32 %v850, 30
        %v852 = vsub.s32 %v848, %v851
        %vm853 = vcmp.lt.s32.totalorder %v852, 0
        %v854 = vsub.s32 0, %v852
        %v855 = vsel %vm853, %v854, %v852
        %v856 = vclz %v855
        %v857 = vsub.s32 %v856, 2
        %vm858 = vcmp.gt.s32.totalorder 0, %v857
        %v859 = vsel %vm858, 0, %v857
        %v860 = vsub.s32 32, %v859
        %v861 = vshll.u32 %v852, %v859
        %v862 = vshrl.u32 %v844, %v860
        %v863 = vor.u32 %v861, %v862
        %v864 = vsub.s32 4294967266, %v859
        %v865 = vadd.s32 %v864, 127
        %v866 = vshll.u32 %v865, 23
        %v867 = vor.u32 4788187, %v866
        %v868 = vand.u32 2147483647, %v867
        %v870 = vcvt.s32.f32 %v863
        %v871 = vmul.f32 %v870, %v868
        %v872 = vxor.u32 %v871, 2147483648
        %v873 = vsel %vm790, %v872, %v871
        %v874 = vsub.s32 4, %v850
        %v875 = vsel %vm790, %v874, %v850
        %v876 = vsel %vm789, %v475, %v873
        %v877 = vsel %vm789, 0, %v875
        %v878 = vcosq.f32.pop %v876
        %v879 = vsinq.f32.pop %v876
        %vm880 = vweird.f32 %v475
        %v881 = vadd.s32 %v877, 3
        %v882 = vand.u32 %v881, 3
        %vm883 = vcmp.lt.s32.totalorder %v882, 2
        %vm884 = vcmp.eq.s32.totalorder %v882, 0
        %v885 = vxor.u32 %v879, 2147483648
        %v886 = vsel %vm884, %v878, %v885
        %vm887 = vcmp.eq.s32.totalorder %v882, 2
        %v888 = vxor.u32 %v878, 2147483648
        %v889 = vsel %vm887, %v888, %v879
        %v890 = vsel %vm883, %v886, %v889
        %v891 = vsel %vm880, nan, %v890
        %v892 = vpack.c.bf16 %v683, %v579
        %v893 = vpack.c.bf16 %v891, %v787
        %v894 = vld [vmem:[%s3] sm:$0xf]
        %v895 = vld [vmem:[%s3 + $0x4] sm:$0xf]
        %v896 = vld [vmem:[%s3 + $0x8] sm:$0xf]
        %v897 = vld [vmem:[%s3 + $0xc] sm:$0xf]
        %v898 = vld [vmem:[%s4] sm:$0xff]
        %v899 = vld [vmem:[%s4 + $0x8] sm:$0xff]
        %v900 = vld [vmem:[%s4 + $0x10] sm:$0xff]
        %v901 = vld [vmem:[%s4 + $0x18] sm:$0xff]
        %903 = vset.pattern.permute.xlu0 0
        %904 = vperm.xlu0 %903, %v898
        %v905 = vpop.permute.xlu0 %904
        %908 = vset.pattern.permute.xlu0 0
        %909 = vperm.xlu0 %908, %v899
        %v910 = vpop.permute.xlu0 %909
        %913 = vset.pattern.permute.xlu0 0
        %914 = vperm.xlu0 %913, %v900
        %v915 = vpop.permute.xlu0 %914
        %918 = vset.pattern.permute.xlu0 0
        %919 = vperm.xlu0 %918, %v901
        %v920 = vpop.permute.xlu0 %919
        %v926 = vunpack.c.l.b16 %v894
        %v927 = vunpack.c.l.b16 %v895
        %v928 = vunpack.c.l.b16 %v896
        %v929 = vunpack.c.l.b16 %v897
        %v930 = vpack.c.b16 %v927, %v926
        %v931 = vpack.c.b16 %v929, %v928
        %vm932 = vcmask 261120
        %v934 = vsel %vm932, %v930, 0
        %v937 = vsel %vm932, %v931, 0
        %939 = vmatprep.subr.bf16.mxu0 0
        %940 = vmatpush1.bf16.msra.mxu0 %v892
        %941 = vmatprep.subr.bf16.mxu0 0
        %942 = vmatpush1.bf16.msra.mxu0 %v893
        %943 = vmatprep.subr.bf16.mxu0 0
        %944 = vmatpush1.bf16.msra.mxu0 0
        %945 = vmatprep.subr.bf16.mxu0 0
        %946 = vmatpush1.bf16.msra.mxu0 0
        %947 = vmatprep.subr.bf16.mxu0 0
        %948 = vmatpush1.bf16.msra.mxu0 0
        %949 = vmatprep.subr.bf16.mxu0 0
        %950 = vmatpush1.bf16.msra.mxu0 0
        %951 = vmatprep.subr.bf16.mxu0 0
        %952 = vmatpush1.bf16.msra.mxu0 0
        %953 = vmatprep.subr.bf16.mxu0 0
        %954 = vmatpush1.bf16.msra.mxu0 0
        %955 = vmatprep.subr.bf16.mxu0 0
        %956 = vmatpush1.bf16.msra.mxu0 0
        %957 = vmatprep.subr.bf16.mxu0 0
        %958 = vmatpush1.bf16.msra.mxu0 0
        %959 = vmatprep.subr.bf16.mxu0 0
        %960 = vmatpush1.bf16.msra.mxu0 0
        %961 = vmatprep.subr.bf16.mxu0 0
        %962 = vmatpush1.bf16.msra.mxu0 0
        %963 = vmatprep.subr.bf16.mxu0 0
        %964 = vmatpush1.bf16.msra.mxu0 0
        %965 = vmatprep.subr.bf16.mxu0 0
        %966 = vmatpush1.bf16.msra.mxu0 0
        %967 = vmatprep.subr.bf16.mxu0 0
        %968 = vmatpush1.bf16.msra.mxu0 0
        %969 = vmatprep.subr.bf16.mxu0 0
        %970 = vmatpush1.bf16.msra.mxu0 0
        %971 = vmatprep.mubr.bf16.mxu0 0
        %972 = vmatmul.mubr.bf16.gmra.mrb[0].mxu0 %v934
        %v973 = vpop.f32.mrb[0].mxu0
        %v974 = vadd.f32 %v905, %v973
        %v975 = vpop.f32.mrb[0].mxu0
        %v976 = vpop.f32.mrb[0].mxu0
        %v977 = vadd.f32 %v910, %v976
        %v978 = vpop.f32.mrb[0].mxu0
        %979 = vmatprep.mubr.bf16.mxu0 0
        %980 = vmatmul.mubr.bf16.gmra.mrb[0].mxu0 %v937
        %v981 = vpop.f32.mrb[0].mxu0
        %v982 = vadd.f32 %v915, %v981
        %v983 = vpop.f32.mrb[0].mxu0
        %v984 = vpop.f32.mrb[0].mxu0
        %v985 = vadd.f32 %v920, %v984
        %v986 = vpop.f32.mrb[0].mxu0
        %987 = vdwg.mxu0
        %v988 = vpack.c.bf16 %v977, %v974
        %v989 = vpack.c.bf16 %v985, %v982
        %v990 = vmul.bf16 %v988, 1056980736
        %v991 = vmul.bf16 %v989, 1056980736
        %v992 = vmul.bf16 %v988, 1027030327
        %v993 = vmul.bf16 %v989, 1027030327
        %v994 = vmul.bf16 %v992, %v988
        %v995 = vmul.bf16 %v993, %v989
        %v996 = vmul.bf16 %v994, %v988
        %v997 = vmul.bf16 %v995, %v989
        %v998 = vadd.bf16 %v988, %v996
        %v999 = vadd.bf16 %v989, %v997
        %v1000 = vmul.bf16 %v998, 1061961548
        %v1001 = vmul.bf16 %v999, 1061961548
        %v1002 = vtanh.bf16.pop %v1000
        %v1003 = vtanh.bf16.pop %v1001
        %v1004 = vadd.bf16 %v1002, 1065369472
        %v1005 = vadd.bf16 %v1003, 1065369472
        %v1006 = vmul.bf16 %v990, %v1004
        %v1007 = vmul.bf16 %v991, %v1005
        %v1008 = vld [vmem:[%s5] sm:$0xf]
        %v1009 = vld [vmem:[%s5 + $0x4] sm:$0xf]
        %v1010 = vld [vmem:[%s5 + $0x8] sm:$0xf]
        %v1011 = vld [vmem:[%s5 + $0xc] sm:$0xf]
        %v1012 = vld [vmem:[%s6] sm:$0xff]
        %v1013 = vld [vmem:[%s6 + $0x8] sm:$0xff]
        %v1014 = vld [vmem:[%s6 + $0x10] sm:$0xff]
        %v1015 = vld [vmem:[%s6 + $0x18] sm:$0xff]
        %1017 = vset.pattern.permute.xlu0 0
        %1018 = vperm.xlu0 %1017, %v1012
        %v1019 = vpop.permute.xlu0 %1018
        %1022 = vset.pattern.permute.xlu0 0
        %1023 = vperm.xlu0 %1022, %v1013
        %v1024 = vpop.permute.xlu0 %1023
        %1027 = vset.pattern.permute.xlu0 0
        %1028 = vperm.xlu0 %1027, %v1014
        %v1029 = vpop.permute.xlu0 %1028
        %1032 = vset.pattern.permute.xlu0 0
        %1033 = vperm.xlu0 %1032, %v1015
        %v1034 = vpop.permute.xlu0 %1033
        %v1040 = vunpack.c.l.b16 %v1008
        %v1041 = vunpack.c.l.b16 %v1009
        %v1042 = vunpack.c.l.b16 %v1010
        %v1043 = vunpack.c.l.b16 %v1011
        %v1044 = vpack.c.b16 %v1041, %v1040
        %v1045 = vpack.c.b16 %v1043, %v1042
        %v1047 = vsel %vm932, %v1044, 0
        %v1050 = vsel %vm932, %v1045, 0
        %1052 = vmatprep.subr.bf16.mxu0 0
        %1053 = vmatpush1.bf16.msra.mxu0 %v1006
        %1054 = vmatprep.subr.bf16.mxu0 0
        %1055 = vmatpush1.bf16.msra.mxu0 %v1007
        %1056 = vmatprep.subr.bf16.mxu0 0
        %1057 = vmatpush1.bf16.msra.mxu0 0
        %1058 = vmatprep.subr.bf16.mxu0 0
        %1059 = vmatpush1.bf16.msra.mxu0 0
        %1060 = vmatprep.subr.bf16.mxu0 0
        %1061 = vmatpush1.bf16.msra.mxu0 0
        %1062 = vmatprep.subr.bf16.mxu0 0
        %1063 = vmatpush1.bf16.msra.mxu0 0
        %1064 = vmatprep.subr.bf16.mxu0 0
        %1065 = vmatpush1.bf16.msra.mxu0 0
        %1066 = vmatprep.subr.bf16.mxu0 0
        %1067 = vmatpush1.bf16.msra.mxu0 0
        %1068 = vmatprep.subr.bf16.mxu0 0
        %1069 = vmatpush1.bf16.msra.mxu0 0
        %1070 = vmatprep.subr.bf16.mxu0 0
        %1071 = vmatpush1.bf16.msra.mxu0 0
        %1072 = vmatprep.subr.bf16.mxu0 0
        %1073 = vmatpush1.bf16.msra.mxu0 0
        %1074 = vmatprep.subr.bf16.mxu0 0
        %1075 = vmatpush1.bf16.msra.mxu0 0
        %1076 = vmatprep.subr.bf16.mxu0 0
        %1077 = vmatpush1.bf16.msra.mxu0 0
        %1078 = vmatprep.subr.bf16.mxu0 0
        %1079 = vmatpush1.bf16.msra.mxu0 0
        %1080 = vmatprep.subr.bf16.mxu0 0
        %1081 = vmatpush1.bf16.msra.mxu0 0
        %1082 = vmatprep.subr.bf16.mxu0 0
        %1083 = vmatpush1.bf16.msra.mxu0 0
        %1084 = vmatprep.mubr.bf16.mxu0 0
        %1085 = vmatmul.mubr.bf16.gmra.mrb[0].mxu0 %v1047
        %v1086 = vpop.f32.mrb[0].mxu0
        %v1087 = vadd.f32 %v1019, %v1086
        %v1088 = vpop.f32.mrb[0].mxu0
        %v1089 = vpop.f32.mrb[0].mxu0
        %v1090 = vadd.f32 %v1024, %v1089
        %v1091 = vpop.f32.mrb[0].mxu0
        %1092 = vmatprep.mubr.bf16.mxu0 0
        %1093 = vmatmul.mubr.bf16.gmra.mrb[0].mxu0 %v1050
        %v1094 = vpop.f32.mrb[0].mxu0
        %v1095 = vadd.f32 %v1029, %v1094
        %v1096 = vpop.f32.mrb[0].mxu0
        %v1097 = vpop.f32.mrb[0].mxu0
        %v1098 = vadd.f32 %v1034, %v1097
        %v1099 = vpop.f32.mrb[0].mxu0
        %1100 = vdwg.mxu0
        %v1101 = vpack.c.bf16 %v1090, %v1087
        %v1102 = vpack.c.bf16 %v1098, %v1095
        %v1103 = vmul.bf16 %v1101, 1056980736
        %v1104 = vmul.bf16 %v1102, 1056980736
        %v1105 = vmul.bf16 %v1101, 1027030327
        %v1106 = vmul.bf16 %v1102, 1027030327
        %v1107 = vmul.bf16 %v1105, %v1101
        %v1108 = vmul.bf16 %v1106, %v1102
        %v1109 = vmul.bf16 %v1107, %v1101
        %v1110 = vmul.bf16 %v1108, %v1102
        %v1111 = vadd.bf16 %v1101, %v1109
        %v1112 = vadd.bf16 %v1102, %v1110
        %v1113 = vmul.bf16 %v1111, 1061961548
        %v1114 = vmul.bf16 %v1112, 1061961548
        %v1115 = vtanh.bf16.pop %v1113
        %v1116 = vtanh.bf16.pop %v1114
        %v1117 = vadd.bf16 %v1115, 1065369472
        %v1118 = vadd.bf16 %v1116, 1065369472
        %v1119 = vmul.bf16 %v1103, %v1117
        %v1120 = vmul.bf16 %v1104, %v1118
        %v1121 = vld [vmem:[%s7] sm:$0xf]
        %v1122 = vld [vmem:[%s7 + $0x4] sm:$0xf]
        %v1123 = vld [vmem:[%s7 + $0x8] sm:$0xf]
        %v1124 = vld [vmem:[%s7 + $0xc] sm:$0xf]
        %v1125 = vld [vmem:[%s8] sm:$0xff]
        %v1126 = vld [vmem:[%s8 + $0x8] sm:$0xff]
        %v1127 = vld [vmem:[%s8 + $0x10] sm:$0xff]
        %v1128 = vld [vmem:[%s8 + $0x18] sm:$0xff]
        %1130 = vset.pattern.permute.xlu0 0
        %1131 = vperm.xlu0 %1130, %v1125
        %v1132 = vpop.permute.xlu0 %1131
        %1135 = vset.pattern.permute.xlu0 0
        %1136 = vperm.xlu0 %1135, %v1126
        %v1137 = vpop.permute.xlu0 %1136
        %1140 = vset.pattern.permute.xlu0 0
        %1141 = vperm.xlu0 %1140, %v1127
        %v1142 = vpop.permute.xlu0 %1141
        %1145 = vset.pattern.permute.xlu0 0
        %1146 = vperm.xlu0 %1145, %v1128
        %v1147 = vpop.permute.xlu0 %1146
        %v1153 = vunpack.c.l.b16 %v1121
        %v1154 = vunpack.c.l.b16 %v1122
        %v1155 = vunpack.c.l.b16 %v1123
        %v1156 = vunpack.c.l.b16 %v1124
        %v1157 = vpack.c.b16 %v1154, %v1153
        %v1158 = vpack.c.b16 %v1156, %v1155
        %v1160 = vsel %vm932, %v1157, 0
        %v1163 = vsel %vm932, %v1158, 0
        %1165 = vmatprep.subr.bf16.mxu0 0
        %1166 = vmatpush1.bf16.msra.mxu0 %v1119
        %1167 = vmatprep.subr.bf16.mxu0 0
        %1168 = vmatpush1.bf16.msra.mxu0 %v1120
        %1169 = vmatprep.subr.bf16.mxu0 0
        %1170 = vmatpush1.bf16.msra.mxu0 0
        %1171 = vmatprep.subr.bf16.mxu0 0
        %1172 = vmatpush1.bf16.msra.mxu0 0
        %1173 = vmatprep.subr.bf16.mxu0 0
        %1174 = vmatpush1.bf16.msra.mxu0 0
        %1175 = vmatprep.subr.bf16.mxu0 0
        %1176 = vmatpush1.bf16.msra.mxu0 0
        %1177 = vmatprep.subr.bf16.mxu0 0
        %1178 = vmatpush1.bf16.msra.mxu0 0
        %1179 = vmatprep.subr.bf16.mxu0 0
        %1180 = vmatpush1.bf16.msra.mxu0 0
        %1181 = vmatprep.subr.bf16.mxu0 0
        %1182 = vmatpush1.bf16.msra.mxu0 0
        %1183 = vmatprep.subr.bf16.mxu0 0
        %1184 = vmatpush1.bf16.msra.mxu0 0
        %1185 = vmatprep.subr.bf16.mxu0 0
        %1186 = vmatpush1.bf16.msra.mxu0 0
        %1187 = vmatprep.subr.bf16.mxu0 0
        %1188 = vmatpush1.bf16.msra.mxu0 0
        %1189 = vmatprep.subr.bf16.mxu0 0
        %1190 = vmatpush1.bf16.msra.mxu0 0
        %1191 = vmatprep.subr.bf16.mxu0 0
        %1192 = vmatpush1.bf16.msra.mxu0 0
        %1193 = vmatprep.subr.bf16.mxu0 0
        %1194 = vmatpush1.bf16.msra.mxu0 0
        %1195 = vmatprep.subr.bf16.mxu0 0
        %1196 = vmatpush1.bf16.msra.mxu0 0
        %1197 = vmatprep.mubr.bf16.mxu0 0
        %1198 = vmatmul.mubr.bf16.gmra.mrb[0].mxu0 %v1160
        %v1199 = vpop.f32.mrb[0].mxu0
        %v1200 = vadd.f32 %v1132, %v1199
        %v1201 = vpop.f32.mrb[0].mxu0
        %v1202 = vpop.f32.mrb[0].mxu0
        %v1203 = vadd.f32 %v1137, %v1202
        %v1204 = vpop.f32.mrb[0].mxu0
        %1205 = vmatprep.mubr.bf16.mxu0 0
        %1206 = vmatmul.mubr.bf16.gmra.mrb[0].mxu0 %v1163
        %v1207 = vpop.f32.mrb[0].mxu0
        %v1208 = vadd.f32 %v1142, %v1207
        %v1209 = vpop.f32.mrb[0].mxu0
        %v1210 = vpop.f32.mrb[0].mxu0
        %v1211 = vadd.f32 %v1147, %v1210
        %v1212 = vpop.f32.mrb[0].mxu0
        %1213 = vdwg.mxu0
        %v1214 = vpack.c.bf16 %v1203, %v1200
        %v1215 = vpack.c.bf16 %v1211, %v1208
        %v1216 = vmul.bf16 %v1214, 1056980736
        %v1217 = vmul.bf16 %v1215, 1056980736
        %v1218 = vmul.bf16 %v1214, 1027030327
        %v1219 = vmul.bf16 %v1215, 1027030327
        %v1220 = vmul.bf16 %v1218, %v1214
        %v1221 = vmul.bf16 %v1219, %v1215
        %v1222 = vmul.bf16 %v1220, %v1214
        %v1223 = vmul.bf16 %v1221, %v1215
        %v1224 = vadd.bf16 %v1214, %v1222
        %v1225 = vadd.bf16 %v1215, %v1223
        %v1226 = vmul.bf16 %v1224, 1061961548
        %v1227 = vmul.bf16 %v1225, 1061961548
        %v1228 = vtanh.bf16.pop %v1226
        %v1229 = vtanh.bf16.pop %v1227
        %v1230 = vadd.bf16 %v1228, 1065369472
        %v1231 = vadd.bf16 %v1229, 1065369472
        %v1232 = vmul.bf16 %v1216, %v1230
        %v1233 = vmul.bf16 %v1217, %v1231
        %v1234 = vld [vmem:[%s9] sm:$0x3]
        %v1235 = vld [vmem:[%s10] sm:$0x7]
        %1237 = vset.pattern.permute.xlu0 0
        %1238 = vperm.xlu0 %1237, %v1235
        %v1239 = vpop.permute.xlu0 %1238
        %v1242 = vsel %vm932, %v1234, 0
        %1244 = vmatprep.subr.bf16.mxu0 0
        %1245 = vmatpush1.bf16.msra.mxu0 %v1232
        %1246 = vmatprep.subr.bf16.mxu0 0
        %1247 = vmatpush1.bf16.msra.mxu0 %v1233
        %1248 = vmatprep.subr.bf16.mxu0 0
        %1249 = vmatpush1.bf16.msra.mxu0 0
        %1250 = vmatprep.subr.bf16.mxu0 0
        %1251 = vmatpush1.bf16.msra.mxu0 0
        %1252 = vmatprep.subr.bf16.mxu0 0
        %1253 = vmatpush1.bf16.msra.mxu0 0
        %1254 = vmatprep.subr.bf16.mxu0 0
        %1255 = vmatpush1.bf16.msra.mxu0 0
        %1256 = vmatprep.subr.bf16.mxu0 0
        %1257 = vmatpush1.bf16.msra.mxu0 0
        %1258 = vmatprep.subr.bf16.mxu0 0
        %1259 = vmatpush1.bf16.msra.mxu0 0
        %1260 = vmatprep.subr.bf16.mxu0 0
        %1261 = vmatpush1.bf16.msra.mxu0 0
        %1262 = vmatprep.subr.bf16.mxu0 0
        %1263 = vmatpush1.bf16.msra.mxu0 0
        %1264 = vmatprep.subr.bf16.mxu0 0
        %1265 = vmatpush1.bf16.msra.mxu0 0
        %1266 = vmatprep.subr.bf16.mxu0 0
        %1267 = vmatpush1.bf16.msra.mxu0 0
        %1268 = vmatprep.subr.bf16.mxu0 0
        %1269 = vmatpush1.bf16.msra.mxu0 0
        %1270 = vmatprep.subr.bf16.mxu0 0
        %1271 = vmatpush1.bf16.msra.mxu0 0
        %1272 = vmatprep.subr.bf16.mxu0 0
        %1273 = vmatpush1.bf16.msra.mxu0 0
        %1274 = vmatprep.subr.bf16.mxu0 0
        %1275 = vmatpush1.bf16.msra.mxu0 0
        %1276 = vmatprep.mubr.bf16.mxu0 0
        %1277 = vmatmul.mubr.bf16.gmra.mrb[0].mxu0 %v1242
        %v1278 = vpop.f32.mrb[0].mxu0
        %v1279 = vadd.f32 %v1239, %v1278
        %v1280 = vpop.f32.mrb[0].mxu0
        %v1281 = vpop.f32.mrb[0].mxu0
        %v1282 = vpop.f32.mrb[0].mxu0
        %1283 = vdwg.mxu0
        %v1284 = vxor.u32 %v1279, 2147483648
        %v1285 = vmul.f32 %v1284, 1.442695
        %v1286 = vpow.pop %v1285
        %v1287 = vadd.f32 %v1286, 1.0
        %v1288 = vrcp.pop %v1287
        %v1289 = vmul.f32 1.0, %v1288
        %1290 = vst [vmem:[%s377] sm:$0x7] %v1289
        %s1291 = sand.u32 %s269, 1
        %s1292 = scalar_lea.sflag [#allocation3], %s1291
        %s1293 = sand.u32 %s269, 1
        %s1294 = smul.addr %s1293, 4
        %s1295 = scalar_lea.vmem [#allocation2], %s1294
        // Predicated region
        $region65: #{tpu_custom_call.1} parent=63 // pred_check
          %p1296 = pneg %p279
        $region66: #{tpu_custom_call.1} parent=63 // pred_check_branch
          %1298 = sbr.rel (%p1296) target = $region68
        $region67: #{tpu_custom_call.1} parent=63 // pred_region
          %s1300 = ssub.s32 64, 64
          %1301 = vsyncadd %s1292, %s1300
          %s1302 = smul.addr %s25, 64
          %s1303 = scalar_lea.hbm %s11, %s1302
          %s1305 = sshll.u32 %s1295, 4
          %s1306 = int_to_ptr.vmem [resolvable:$true] %s1305
          %1308 = dma.vmem_to_hbm [thread:$0]  %s1306, 64, %s1303, %s1292
        $region68: #{tpu_custom_call.1} parent=63 // pred_fallthru
          _
      $region64: #{tpu_custom_call.1} parent=5 // pred_fallthru
        _
      %p1309 = scmp.le.s32.totalorder 2, %s20
      // Predicated region
      $region69: #{tpu_custom_call.1} parent=5 // pred_check
        %p1310 = pneg %p1309
      $region70: #{tpu_custom_call.1} parent=5 // pred_check_branch
        %1312 = sbr.rel (%p1310) target = $region72
      $region71: #{tpu_custom_call.1} parent=5 // pred_region
        %s1313 = ssub.s32 %s20, 2
        // Predicated region
        $region73: #{tpu_custom_call.1} parent=71 // pred_check
          %p1314 = pneg %p285
        $region74: #{tpu_custom_call.1} parent=71 // pred_check_branch
          %1316 = sbr.rel (%p1314) target = $region76
        $region75: #{tpu_custom_call.1} parent=71 // pred_region
          %s1317 = sand.u32 %s270, 1
          %s1318 = scalar_lea.sflag [#allocation3], %s1317
          %s1319 = sand.u32 %s270, 1
          %s1320 = smul.addr %s1319, 4
          %s1321 = scalar_lea.vmem [#allocation2], %s1320
          %1322 = dma.done %s1318, 64
        $region76: #{tpu_custom_call.1} parent=71 // pred_fallthru
          _
      $region72: #{tpu_custom_call.1} parent=5 // pred_fallthru
        _
    $region6: #{tpu_custom_call.1} parent=1 // loop_footer
      %s24 = sadd.s32 1, %s20
    $region7: #{tpu_custom_call.1} parent=1 // loop_footer_branch
      %19 = sbr.rel target = $region3
    $region8: #{tpu_custom_call.1} parent=1 // loop_exit
      _
    %1323 = vsyncpa [#allocation3], 1
    %s1324 = scalar_lea.sflag [#allocation3], 1
    %1325 = vsyncpa %s1324, 1

</llo_original>
